<compile_context>
chip_gen: v6e
topology: v6e:2x2x1
jax: 0.10.0
libtpu: 0.0.40
codegen_flags: <defaults>
</compile_context>

<pallas_src>
import functools

import jax
import jax.numpy as jnp
from jax import lax
from jax.experimental import pallas as pl
from jax.experimental.pallas import tpu as pltpu


# ---------------------------------------------------------------------------
# Fused Pallas kernel: layer axis (0/1) x row-tile axis.
# ---------------------------------------------------------------------------
def arma2_kernel(adj_ref, x_ref, dinv_ref, w1_ref, v1_ref, b1_ref,
                 w2_ref, v2_ref, b2_ref, o_ref, x0_ref, x0s_ref):
    layer = pl.program_id(0)
    tile = pl.program_id(1)
    tm = adj_ref.shape[0]
    row0 = pl.multiple_of(tile * tm, 8)          # tm is a multiple of 8

    adj_t = adj_ref[...]                          # [tm, N] bf16 (streamed)
    dinv_t = dinv_ref[pl.ds(row0, tm), :]         # [tm, 1]  f32

    @pl.when(layer == 0)
    def _layer1():
        # Propagate first (reassociated): ax = D^-1/2 A D^-1/2 @ x for this tile.
        xs = (dinv_ref[...] * x_ref[...]).astype(jnp.bfloat16)            # [N, F]
        ax = dinv_t * jnp.dot(adj_t, xs,
                              preferred_element_type=jnp.float32)         # [tm, F]
        # Then project: two skinny-K matmuls, no packed-slab lane slicing.
        x_t = x_ref[pl.ds(row0, tm), :]                                   # [tm, F]
        h = (jnp.dot(ax, w1_ref[...], preferred_element_type=jnp.float32)
             + jnp.dot(x_t, v1_ref[...], preferred_element_type=jnp.float32)
             + b1_ref[...])
        x0 = jnp.maximum(h, 0.0)                  # ARMAConv act (outer ReLU no-op)
        x0_ref[pl.ds(row0, tm), :] = x0
        # Pre-scaled bf16 copy is what layer 2's propagation consumes.
        x0s_ref[pl.ds(row0, tm), :] = (dinv_t * x0).astype(jnp.bfloat16)
        # Keep the (unread) output buffer deterministic on the first pass.
        o_ref[...] = jnp.zeros_like(o_ref)

    @pl.when(layer == 1)
    def _layer2():
        ax0 = dinv_t * jnp.dot(adj_t, x0s_ref[...],
                               preferred_element_type=jnp.float32)        # [tm, H]
        x0_t = x0_ref[pl.ds(row0, tm), :]                                 # [tm, H]
        o = (jnp.dot(ax0, w2_ref[...], preferred_element_type=jnp.float32)
             + jnp.dot(x0_t, v2_ref[...], preferred_element_type=jnp.float32)
             + b2_ref[...])
        o_ref[...] = o.astype(o_ref.dtype)        # lane-dense (padded) store


# ---------------------------------------------------------------------------
# Wrapper: lane padding, bf16 adjacency, row tiling, pallas_call.
# ---------------------------------------------------------------------------
def arma2_pallas(x, adj, dinv, w1, v1, b1, w2, v2, b2, *, row_tile=512):
    n, nfeat = x.shape
    nhid = w1.shape[1]
    nclass = w2.shape[1]

    # Lane-dense layer-2 / output width (multiple of 128); real columns are
    # sliced back out after the call.  Padded columns compute exact zeros.
    cpad = max(128, ((nclass + 127) // 128) * 128)
    w2p = jnp.zeros((nhid, cpad), jnp.float32).at[:, :nclass].set(w2)
    v2p = jnp.zeros((nhid, cpad), jnp.float32).at[:, :nclass].set(v2)
    b2p = jnp.zeros((1, cpad), jnp.float32).at[:, :nclass].set(b2)

    # {0,1}-valued adjacency is exact in bf16: halves the dominant stream.
    adj_bf16 = adj.astype(jnp.bfloat16)

    tm = min(n, row_tile)
    if n % tm != 0:                 # TODO(synk): mask ragged last row tile
        tm = n
    nrt = n // tm

    resident = lambda l, i: (0, 0)  # fetched once, stays in VMEM

    out = pl.pallas_call(
        arma2_kernel,
        out_shape=jax.ShapeDtypeStruct((n, cpad), jnp.float32),
        grid=(2, nrt),              # (layer, row tile); layer 1 consumes all of
                                    # layer 0's x0, so both axes are sequential.
        in_specs=[
            # adj row tiles streamed (double-buffered by the BlockSpec pipeline;
            # consider pipeline_mode=pl.Buffered(3) on v5e if the DMA is exposed).
            pl.BlockSpec((tm, n), lambda l, i: (i, 0)),
            pl.BlockSpec((n, nfeat), resident),          # x
            pl.BlockSpec((n, 1), resident),              # dinv
            pl.BlockSpec((nfeat, nhid), resident),       # W1 (init)
            pl.BlockSpec((nfeat, nhid), resident),       # V1 (root)
            pl.BlockSpec((1, nhid), resident),           # b1
            pl.BlockSpec((nhid, cpad), resident),        # W2 (padded)
            pl.BlockSpec((nhid, cpad), resident),        # V2 (padded)
            pl.BlockSpec((1, cpad), resident),           # b2 (padded)
        ],
        out_specs=pl.BlockSpec((tm, cpad), lambda l, i: (i, 0)),
        scratch_shapes=[
            pltpu.VMEM((n, nhid), jnp.float32),    # x0  (layer-1 activations)
            pltpu.VMEM((n, nhid), jnp.bfloat16),   # dinv * x0 (layer-2 prop input)
        ],
        # TODO(synk): on v7x, megacore-parallelising the row-tile axis needs x0
        # in VMEM_SHARED (or a two-call split); with per-core scratch both axes
        # must stay sequential.  Re-derive tm / vmem_limit_bytes per generation
        # (v7x has 64 MiB VMEM vs 128 MiB on v5e/v6e).
        compiler_params=pltpu.CompilerParams(
            dimension_semantics=("arbitrary", "arbitrary")),
    )(adj_bf16, x, dinv, w1, v1, b1, w2p, v2p, b2p)
    return out[:, :nclass]


# ---------------------------------------------------------------------------
# Glue (plain JAX): parameter setup and the ARMA2 forward wrapper.
# ---------------------------------------------------------------------------
def glorot(key, shape):
    fan_in, fan_out = shape
    scale = jnp.sqrt(6.0 / (fan_in + fan_out))
    return jax.random.uniform(key, shape, jnp.float32, -scale, scale)


def init_arma2_params(key, nfeat, nhid, nclass):
    k = jax.random.split(key, 4)
    return {
        "w1": glorot(k[0], (nfeat, nhid)),   # conv1 W_init
        "v1": glorot(k[1], (nfeat, nhid)),   # conv1 W_root
        "b1": jnp.zeros((1, nhid), jnp.float32),
        "w2": glorot(k[2], (nhid, nclass)),  # conv2 W_init
        "v2": glorot(k[3], (nhid, nclass)),  # conv2 W_root
        "b2": jnp.zeros((1, nclass), jnp.float32),
    }


@functools.partial(jax.jit, static_argnames=("dropout_p",))
def arma2_forward(x, adj, params, dropout_p=0.5):
    # dropout_p kept for interface fidelity; eval-mode dropout is identity.
    del dropout_p
    # deg / dinv hoisted out of the kernel (needed for all nodes once tiled).
    deg = jnp.sum(adj, axis=1, keepdims=True)
    dinv = jnp.where(deg > 0.0, lax.rsqrt(deg), 0.0)
    return arma2_pallas(x, adj, dinv,
                        params["w1"], params["v1"], params["b1"],
                        params["w2"], params["v2"], params["b2"])


if __name__ == "__main__":
    N, NFEAT, NHID, NCLASS = 128, 32, 64, 8
    DROPOUT = 0.5

    key = jax.random.PRNGKey(0)
    kx, ka, kp = jax.random.split(key, 3)

    # Node features and a random symmetric {0,1} adjacency with self-loops.
    x = jax.random.normal(kx, (N, NFEAT), jnp.float32)
    a = (jax.random.uniform(ka, (N, N)) < 0.1).astype(jnp.float32)
    adj = jnp.maximum(a, a.T)
    adj = adj.at[jnp.arange(N), jnp.arange(N)].set(1.0)

    params = init_arma2_params(kp, NFEAT, NHID, NCLASS)

    out = arma2_forward(x, adj, params, dropout_p=DROPOUT)
    out = jax.block_until_ready(out)
    assert out.shape == (N, NCLASS) and out.dtype == jnp.float32

    # Pure-JAX f32 reference (explicit A_hat) for a correctness sanity check.
    def reference(x, adj, p):
        deg = adj.sum(axis=1)
        dinv = jnp.where(deg > 0, 1.0 / jnp.sqrt(deg), 0.0)
        a_hat = adj * dinv[:, None] * dinv[None, :]
        x0 = jnp.maximum(a_hat @ (x @ p["w1"]) + x @ p["v1"] + p["b1"], 0.0)
        return a_hat @ (x0 @ p["w2"]) + x0 @ p["v2"] + p["b2"]

    ref = reference(x, adj, params)
    # bf16 propagation operands (f32 accumulation) -> slightly looser tolerance.
    assert jnp.allclose(out, ref, atol=2e-2, rtol=2e-2)
    print("KERNEL_OK")
</pallas_src>

<mosaic_0001>
module attributes {stable_mosaic.version = 11 : i64} {
  func.func @arma2_kernel(%arg0: i32, %arg1: i32, %arg2: memref<128x128xbf16, #tpu.memory_space<vmem>>, %arg3: memref<128x32xf32, #tpu.memory_space<vmem>>, %arg4: memref<128x1xf32, #tpu.memory_space<vmem>>, %arg5: memref<32x64xf32, #tpu.memory_space<vmem>>, %arg6: memref<32x64xf32, #tpu.memory_space<vmem>>, %arg7: memref<1x64xf32, #tpu.memory_space<vmem>>, %arg8: memref<64x128xf32, #tpu.memory_space<vmem>>, %arg9: memref<64x128xf32, #tpu.memory_space<vmem>>, %arg10: memref<1x128xf32, #tpu.memory_space<vmem>>, %arg11: memref<128x128xf32, #tpu.memory_space<vmem>>, %arg12: memref<128x64xf32, #tpu.memory_space<vmem>>, %arg13: memref<128x64xbf16, #tpu.memory_space<vmem>>) attributes {dimension_semantics = [#tpu.dimension_semantics<arbitrary>, #tpu.dimension_semantics<arbitrary>], iteration_bounds = array<i64: 2, 1>, scalar_prefetch = 0 : i64, scratch_operands = 2 : i64, tpu.core_type = #tpu.core_type<tc>, window_params = [{transform_indices = @transform_0, window_bounds = array<i64: 128, 128>}, {pipeline_mode = #tpu.pipeline_mode<synchronous>, transform_indices = @transform_1, window_bounds = array<i64: 128, 32>}, {pipeline_mode = #tpu.pipeline_mode<synchronous>, transform_indices = @transform_2, window_bounds = array<i64: 128, 1>}, {pipeline_mode = #tpu.pipeline_mode<synchronous>, transform_indices = @transform_3, window_bounds = array<i64: 32, 64>}, {pipeline_mode = #tpu.pipeline_mode<synchronous>, transform_indices = @transform_4, window_bounds = array<i64: 32, 64>}, {pipeline_mode = #tpu.pipeline_mode<synchronous>, transform_indices = @transform_5, window_bounds = array<i64: 1, 64>}, {pipeline_mode = #tpu.pipeline_mode<synchronous>, transform_indices = @transform_6, window_bounds = array<i64: 64, 128>}, {pipeline_mode = #tpu.pipeline_mode<synchronous>, transform_indices = @transform_7, window_bounds = array<i64: 64, 128>}, {pipeline_mode = #tpu.pipeline_mode<synchronous>, transform_indices = @transform_8, window_bounds = array<i64: 1, 128>}, {transform_indices = @transform_9, window_bounds = array<i64: 128, 128>}]} {
    %c128_i32 = arith.constant 128 : i32
    %0 = arith.muli %arg1, %c128_i32 : i32
    %1 = tpu.assume_multiple %0, 8 : i32
    %c0 = arith.constant 0 : index
    %c0_0 = arith.constant 0 : index
    %2 = vector.load %arg2[%c0, %c0_0] : memref<128x128xbf16, #tpu.memory_space<vmem>>, vector<128x128xbf16>
    %3 = arith.index_cast %1 : i32 to index
    %c0_1 = arith.constant 0 : index
    %4 = vector.load %arg4[%3, %c0_1] : memref<128x1xf32, #tpu.memory_space<vmem>>, vector<128x1xf32>
    %c0_i32 = arith.constant 0 : i32
    %5 = arith.cmpi eq, %arg0, %c0_i32 : i32
    %6 = arith.extui %5 : i1 to i32
    %c0_i32_2 = arith.constant 0 : i32
    %7 = arith.cmpi ne, %6, %c0_i32_2 : i32
    scf.if %7 {
      %c0_4 = arith.constant 0 : index
      %c0_5 = arith.constant 0 : index
      %11 = vector.load %arg4[%c0_4, %c0_5] : memref<128x1xf32, #tpu.memory_space<vmem>>, vector<128x1xf32>
      %c0_6 = arith.constant 0 : index
      %c0_7 = arith.constant 0 : index
      %12 = vector.load %arg3[%c0_6, %c0_7] : memref<128x32xf32, #tpu.memory_space<vmem>>, vector<128x32xf32>
      %13 = vector.broadcast %11 : vector<128x1xf32> to vector<128x32xf32>
      %14 = arith.mulf %13, %12 : vector<128x32xf32>
      %15 = arith.truncf %14 : vector<128x32xf32> to vector<128x32xbf16>
      %cst = arith.constant dense<0.000000e+00> : vector<128x32xf32>
      %16 = tpu.matmul %2, %15, %cst {dimension_numbers = #tpu.dot_dimension_numbers<[1], [0], [0], [1], [0, 0, 1, 1], [], []>} : vector<128x128xbf16>, vector<128x32xbf16>, vector<128x32xf32> -> vector<128x32xf32>
      %17 = vector.broadcast %4 : vector<128x1xf32> to vector<128x32xf32>
      %18 = arith.mulf %17, %16 : vector<128x32xf32>
      %19 = arith.index_cast %1 : i32 to index
      %c0_8 = arith.constant 0 : index
      %20 = vector.load %arg3[%19, %c0_8] : memref<128x32xf32, #tpu.memory_space<vmem>>, vector<128x32xf32>
      %c0_9 = arith.constant 0 : index
      %c0_10 = arith.constant 0 : index
      %21 = vector.load %arg5[%c0_9, %c0_10] : memref<32x64xf32, #tpu.memory_space<vmem>>, vector<32x64xf32>
      %cst_11 = arith.constant dense<0.000000e+00> : vector<128x64xf32>
      %22 = tpu.matmul %18, %21, %cst_11 {dimension_numbers = #tpu.dot_dimension_numbers<[1], [0], [0], [1], [0, 0, 1, 1], [], []>} : vector<128x32xf32>, vector<32x64xf32>, vector<128x64xf32> -> vector<128x64xf32>
      %c0_12 = arith.constant 0 : index
      %c0_13 = arith.constant 0 : index
      %23 = vector.load %arg6[%c0_12, %c0_13] : memref<32x64xf32, #tpu.memory_space<vmem>>, vector<32x64xf32>
      %cst_14 = arith.constant dense<0.000000e+00> : vector<128x64xf32>
      %24 = tpu.matmul %20, %23, %cst_14 {dimension_numbers = #tpu.dot_dimension_numbers<[1], [0], [0], [1], [0, 0, 1, 1], [], []>} : vector<128x32xf32>, vector<32x64xf32>, vector<128x64xf32> -> vector<128x64xf32>
      %25 = arith.addf %22, %24 : vector<128x64xf32>
      %c0_15 = arith.constant 0 : index
      %c0_16 = arith.constant 0 : index
      %26 = vector.load %arg7[%c0_15, %c0_16] : memref<1x64xf32, #tpu.memory_space<vmem>>, vector<1x64xf32>
      %27 = vector.broadcast %26 : vector<1x64xf32> to vector<128x64xf32>
      %28 = arith.addf %25, %27 : vector<128x64xf32>
      %cst_17 = arith.constant 0.000000e+00 : f32
      %29 = vector.broadcast %cst_17 : f32 to vector<128x64xf32>
      %30 = arith.maximumf %28, %29 : vector<128x64xf32>
      %31 = arith.index_cast %1 : i32 to index
      %c0_18 = arith.constant 0 : index
      %32 = vector.load %arg12[%31, %c0_18] : memref<128x64xf32, #tpu.memory_space<vmem>>, vector<128x64xf32>
      tpu.vector_store %arg12[%31, %c0_18], %30 {strides = array<i32>} : memref<128x64xf32, #tpu.memory_space<vmem>>, vector<128x64xf32>,
      %33 = vector.broadcast %4 : vector<128x1xf32> to vector<128x64xf32>
      %34 = arith.mulf %33, %30 : vector<128x64xf32>
      %35 = arith.truncf %34 : vector<128x64xf32> to vector<128x64xbf16>
      %36 = arith.index_cast %1 : i32 to index
      %c0_19 = arith.constant 0 : index
      %37 = vector.load %arg13[%36, %c0_19] : memref<128x64xbf16, #tpu.memory_space<vmem>>, vector<128x64xbf16>
      tpu.vector_store %arg13[%36, %c0_19], %35 {strides = array<i32>} : memref<128x64xbf16, #tpu.memory_space<vmem>>, vector<128x64xbf16>,
      %cst_20 = arith.constant 0.000000e+00 : f32
      %38 = vector.broadcast %cst_20 : f32 to vector<128x128xf32>
      %c0_21 = arith.constant 0 : index
      %c0_22 = arith.constant 0 : index
      %39 = vector.load %arg11[%c0_21, %c0_22] : memref<128x128xf32, #tpu.memory_space<vmem>>, vector<128x128xf32>
      tpu.vector_store %arg11[%c0_21, %c0_22], %38 {strides = array<i32>} : memref<128x128xf32, #tpu.memory_space<vmem>>, vector<128x128xf32>,
    } else {
    }
    %c1_i32 = arith.constant 1 : i32
    %8 = arith.cmpi eq, %arg0, %c1_i32 : i32
    %9 = arith.extui %8 : i1 to i32
    %c0_i32_3 = arith.constant 0 : i32
    %10 = arith.cmpi ne, %9, %c0_i32_3 : i32
    scf.if %10 {
      %c0_4 = arith.constant 0 : index
      %c0_5 = arith.constant 0 : index
      %11 = vector.load %arg13[%c0_4, %c0_5] : memref<128x64xbf16, #tpu.memory_space<vmem>>, vector<128x64xbf16>
      %cst = arith.constant dense<0.000000e+00> : vector<128x64xf32>
      %12 = tpu.matmul %2, %11, %cst {dimension_numbers = #tpu.dot_dimension_numbers<[1], [0], [0], [1], [0, 0, 1, 1], [], []>} : vector<128x128xbf16>, vector<128x64xbf16>, vector<128x64xf32> -> vector<128x64xf32>
      %13 = vector.broadcast %4 : vector<128x1xf32> to vector<128x64xf32>
      %14 = arith.mulf %13, %12 : vector<128x64xf32>
      %15 = arith.index_cast %1 : i32 to index
      %c0_6 = arith.constant 0 : index
      %16 = vector.load %arg12[%15, %c0_6] : memref<128x64xf32, #tpu.memory_space<vmem>>, vector<128x64xf32>
      %c0_7 = arith.constant 0 : index
      %c0_8 = arith.constant 0 : index
      %17 = vector.load %arg8[%c0_7, %c0_8] : memref<64x128xf32, #tpu.memory_space<vmem>>, vector<64x128xf32>
      %cst_9 = arith.constant dense<0.000000e+00> : vector<128x128xf32>
      %18 = tpu.matmul %14, %17, %cst_9 {dimension_numbers = #tpu.dot_dimension_numbers<[1], [0], [0], [1], [0, 0, 1, 1], [], []>} : vector<128x64xf32>, vector<64x128xf32>, vector<128x128xf32> -> vector<128x128xf32>
      %c0_10 = arith.constant 0 : index
      %c0_11 = arith.constant 0 : index
      %19 = vector.load %arg9[%c0_10, %c0_11] : memref<64x128xf32, #tpu.memory_space<vmem>>, vector<64x128xf32>
      %cst_12 = arith.constant dense<0.000000e+00> : vector<128x128xf32>
      %20 = tpu.matmul %16, %19, %cst_12 {dimension_numbers = #tpu.dot_dimension_numbers<[1], [0], [0], [1], [0, 0, 1, 1], [], []>} : vector<128x64xf32>, vector<64x128xf32>, vector<128x128xf32> -> vector<128x128xf32>
      %21 = arith.addf %18, %20 : vector<128x128xf32>
      %c0_13 = arith.constant 0 : index
      %c0_14 = arith.constant 0 : index
      %22 = vector.load %arg10[%c0_13, %c0_14] : memref<1x128xf32, #tpu.memory_space<vmem>>, vector<1x128xf32>
      %23 = vector.broadcast %22 : vector<1x128xf32> to vector<128x128xf32>
      %24 = arith.addf %21, %23 : vector<128x128xf32>
      %c0_15 = arith.constant 0 : index
      %c0_16 = arith.constant 0 : index
      %25 = vector.load %arg11[%c0_15, %c0_16] : memref<128x128xf32, #tpu.memory_space<vmem>>, vector<128x128xf32>
      tpu.vector_store %arg11[%c0_15, %c0_16], %24 {strides = array<i32>} : memref<128x128xf32, #tpu.memory_space<vmem>>, vector<128x128xf32>,
    } else {
    }
    return
  }
  func.func @transform_0(%arg0: i32, %arg1: i32) -> (i32, i32) {
    %c0_i32 = arith.constant 0 : i32
    %c0_i32_0 = arith.constant 0 : i32
    return %arg1, %c0_i32 : i32, i32
  }
  func.func @transform_1(%arg0: i32, %arg1: i32) -> (i32, i32) {
    %c0_i32 = arith.constant 0 : i32
    %c0_i32_0 = arith.constant 0 : i32
    %c0_i32_1 = arith.constant 0 : i32
    return %c0_i32, %c0_i32_0 : i32, i32
  }
  func.func @transform_2(%arg0: i32, %arg1: i32) -> (i32, i32) {
    %c0_i32 = arith.constant 0 : i32
    %c0_i32_0 = arith.constant 0 : i32
    %c0_i32_1 = arith.constant 0 : i32
    return %c0_i32, %c0_i32_0 : i32, i32
  }
  func.func @transform_3(%arg0: i32, %arg1: i32) -> (i32, i32) {
    %c0_i32 = arith.constant 0 : i32
    %c0_i32_0 = arith.constant 0 : i32
    %c0_i32_1 = arith.constant 0 : i32
    return %c0_i32, %c0_i32_0 : i32, i32
  }
  func.func @transform_4(%arg0: i32, %arg1: i32) -> (i32, i32) {
    %c0_i32 = arith.constant 0 : i32
    %c0_i32_0 = arith.constant 0 : i32
    %c0_i32_1 = arith.constant 0 : i32
    return %c0_i32, %c0_i32_0 : i32, i32
  }
  func.func @transform_5(%arg0: i32, %arg1: i32) -> (i32, i32) {
    %c0_i32 = arith.constant 0 : i32
    %c0_i32_0 = arith.constant 0 : i32
    %c0_i32_1 = arith.constant 0 : i32
    return %c0_i32, %c0_i32_0 : i32, i32
  }
  func.func @transform_6(%arg0: i32, %arg1: i32) -> (i32, i32) {
    %c0_i32 = arith.constant 0 : i32
    %c0_i32_0 = arith.constant 0 : i32
    %c0_i32_1 = arith.constant 0 : i32
    return %c0_i32, %c0_i32_0 : i32, i32
  }
  func.func @transform_7(%arg0: i32, %arg1: i32) -> (i32, i32) {
    %c0_i32 = arith.constant 0 : i32
    %c0_i32_0 = arith.constant 0 : i32
    %c0_i32_1 = arith.constant 0 : i32
    return %c0_i32, %c0_i32_0 : i32, i32
  }
  func.func @transform_8(%arg0: i32, %arg1: i32) -> (i32, i32) {
    %c0_i32 = arith.constant 0 : i32
    %c0_i32_0 = arith.constant 0 : i32
    %c0_i32_1 = arith.constant 0 : i32
    return %c0_i32, %c0_i32_0 : i32, i32
  }
  func.func @transform_9(%arg0: i32, %arg1: i32) -> (i32, i32) {
    %c0_i32 = arith.constant 0 : i32
    %c0_i32_0 = arith.constant 0 : i32
    return %arg1, %c0_i32 : i32, i32
  }
}

</mosaic_0001>

<llo_original>
// kernel: arma2_forward.1
$region0: #{arma2_forward.1}
  #allocation0 [shape = 'u32[]', space=smem, size = 0x4, offset = 0x4, fixed_abs, tag = 'smem constant byte address 0x4 - core index']
  #allocation1 [shape = 'u32[144,128]{1,0:T(1,128)}', space=vmem, size = 0x12000, scoped, tag = 'internal scratch']
  #allocation2 [shape = 'f32[128,64]{1,0:T(8,128)}', space=vmem, size = 0x10000, scoped, tag = 'scratch operand']
  #allocation3 [shape = 'bf16[128,64]{1,0:T(8,128)(2,1)}', space=vmem, size = 0x8000, scoped, tag = 'scratch operand']
  %s0 = inlined_call_operand.vmem [shape: bf16[128,128], index: 0, kind: input, shape index: {}]
  %s1 = inlined_call_operand.vmem [shape: f32[128,32], index: 1, kind: input, shape index: {}]
  %s2 = inlined_call_operand.vmem [shape: f32[128,1], index: 2, kind: input, shape index: {}]
  %s3 = inlined_call_operand.vmem [shape: f32[32,64], index: 3, kind: input, shape index: {}]
  %s4 = inlined_call_operand.vmem [shape: f32[32,64], index: 4, kind: input, shape index: {}]
  %s5 = inlined_call_operand.vmem [shape: f32[1,64], index: 5, kind: input, shape index: {}]
  %s6 = inlined_call_operand.vmem [shape: f32[64,128], index: 6, kind: input, shape index: {}]
  %s7 = inlined_call_operand.vmem [shape: f32[64,128], index: 7, kind: input, shape index: {}]
  %s8 = inlined_call_operand.vmem [shape: f32[1,128], index: 8, kind: input, shape index: {}]
  %s9 = inlined_call_operand.vmem [shape: f32[128,128], index: 9, kind: output, shape index: {}]
  %s10 = sld [smem:[#allocation0]]
  $region77: #{arma2_forward.1} parent=0
    _
  %s12 = ssub.s32 1, %s10
  %s13 = scalar_select 0, %s12, %s10
  loop: start=0, step=1, limit=4
  $region2: #{arma2_forward.1} parent=0 // loop_pre_header
    _
  $region3: #{arma2_forward.1} parent=0 // loop_header
    %s15 = sphi 0, %s19
    %p16 = scmp.ge.s32.totalorder %s15, 4
    %s22 = sphi 0, %s34
    %s23 = sphi 0, %s30
    %s24 = sphi 0, %s22
    %s25 = sphi 0, %s23
    %s26 = sphi 0, %s24
    %s27 = sphi 0, %s25
    %s37 = sphi 0, %s39
    %s40 = sphi 0, %s37
    %s41 = sphi 0, %s40
    %s57 = sphi 0, %s41
    %s61 = sphi 0, %s61
    %s63 = sphi 0, %s61
    %s64 = sphi 0, %s63
    %s78 = sphi 0, %s64
    %s82 = sphi 0, %s82
    %s84 = sphi 0, %s82
    %s85 = sphi 0, %s84
    %s99 = sphi 0, %s85
    %s103 = sphi 0, %s103
    %s105 = sphi 0, %s103
    %s106 = sphi 0, %s105
    %s120 = sphi 0, %s106
    %s124 = sphi 0, %s124
    %s126 = sphi 0, %s124
    %s127 = sphi 0, %s126
    %s141 = sphi 0, %s127
    %s145 = sphi 0, %s145
    %s147 = sphi 0, %s145
    %s148 = sphi 0, %s147
    %s162 = sphi 0, %s148
    %s166 = sphi 0, %s166
    %s168 = sphi 0, %s166
    %s169 = sphi 0, %s168
    %s183 = sphi 0, %s169
    %s187 = sphi 0, %s187
    %s189 = sphi 0, %s187
    %s190 = sphi 0, %s189
    %s204 = sphi 0, %s190
    %s208 = sphi 0, %s208
    %s210 = sphi 0, %s208
    %s211 = sphi 0, %s210
    %s225 = sphi 0, %s211
    %s231 = sphi 0, %s233
    %s234 = sphi 0, %s231
    %s235 = sphi 0, %s234
    %s251 = sphi 0, %s235
  $region4: #{arma2_forward.1} parent=0 // loop_header_branch
    %18 = sbr.rel (%p16) target = $region8
  $region5: #{arma2_forward.1} parent=0 // loop_body
    %s20 = ssub.s32 %s15, 1
    %s21 = ssub.s32 %s15, 2
    %s28 = sadd.s32 1, %s23
    %p29 = scmp.ge.s32.totalorder %s28, 1
    %s30 = scalar_select %p29, 0, %s28
    %s31 = sadd.s32 1, %s22
    %s32 = scalar_select %p29, %s31, %s22
    %p33 = scmp.ge.s32.totalorder %s32, 2
    %s34 = scalar_select %p33, 0, %s32
    %s35 = ssub.s32 %s23, %s30
    %p36 = scmp.eq.s32.totalorder %s35, 0
    %s38 = sadd.s32 %s37, 1
    %s39 = scalar_select %p36, %s37, %s38
    %p42 = pneg %p36
    %p43 = scmp.eq.s32.totalorder %s15, 1
    %p44 = por %p42, %p43
    %p45 = scmp.ne.s32.totalorder %s37, %s40
    %p46 = scmp.eq.s32.totalorder %s15, 0
    %p47 = por %p45, %p46
    %p48 = scmp.ne.s32.totalorder %s37, %s40
    %p49 = scmp.eq.s32.totalorder %s20, 1
    %p50 = por %p48, %p49
    %p51 = scmp.ne.s32.totalorder %s40, %s41
    %p52 = scmp.eq.s32.totalorder %s20, 0
    %p53 = por %p51, %p52
    %p54 = scmp.ne.s32.totalorder %s40, %s41
    %p55 = scmp.eq.s32.totalorder %s21, 1
    %p56 = por %p54, %p55
    %p58 = scmp.ne.s32.totalorder %s41, %s57
    %p59 = scmp.eq.s32.totalorder %s21, 0
    %p60 = por %p58, %p59
    %s62 = sadd.s32 %s61, 1
    %p65 = scmp.eq.s32.totalorder %s15, 1
    %p66 = scmp.ne.s32.totalorder %s61, %s63
    %p67 = scmp.eq.s32.totalorder %s15, 0
    %p68 = por %p66, %p67
    %p69 = scmp.ne.s32.totalorder %s61, %s63
    %p70 = scmp.eq.s32.totalorder %s20, 1
    %p71 = por %p69, %p70
    %p72 = scmp.ne.s32.totalorder %s63, %s64
    %p73 = scmp.eq.s32.totalorder %s20, 0
    %p74 = por %p72, %p73
    %p75 = scmp.ne.s32.totalorder %s63, %s64
    %p76 = scmp.eq.s32.totalorder %s21, 1
    %p77 = por %p75, %p76
    %p79 = scmp.ne.s32.totalorder %s64, %s78
    %p80 = scmp.eq.s32.totalorder %s21, 0
    %p81 = por %p79, %p80
    %s83 = sadd.s32 %s82, 1
    %p86 = scmp.eq.s32.totalorder %s15, 1
    %p87 = scmp.ne.s32.totalorder %s82, %s84
    %p88 = scmp.eq.s32.totalorder %s15, 0
    %p89 = por %p87, %p88
    %p90 = scmp.ne.s32.totalorder %s82, %s84
    %p91 = scmp.eq.s32.totalorder %s20, 1
    %p92 = por %p90, %p91
    %p93 = scmp.ne.s32.totalorder %s84, %s85
    %p94 = scmp.eq.s32.totalorder %s20, 0
    %p95 = por %p93, %p94
    %p96 = scmp.ne.s32.totalorder %s84, %s85
    %p97 = scmp.eq.s32.totalorder %s21, 1
    %p98 = por %p96, %p97
    %p100 = scmp.ne.s32.totalorder %s85, %s99
    %p101 = scmp.eq.s32.totalorder %s21, 0
    %p102 = por %p100, %p101
    %s104 = sadd.s32 %s103, 1
    %p107 = scmp.eq.s32.totalorder %s15, 1
    %p108 = scmp.ne.s32.totalorder %s103, %s105
    %p109 = scmp.eq.s32.totalorder %s15, 0
    %p110 = por %p108, %p109
    %p111 = scmp.ne.s32.totalorder %s103, %s105
    %p112 = scmp.eq.s32.totalorder %s20, 1
    %p113 = por %p111, %p112
    %p114 = scmp.ne.s32.totalorder %s105, %s106
    %p115 = scmp.eq.s32.totalorder %s20, 0
    %p116 = por %p114, %p115
    %p117 = scmp.ne.s32.totalorder %s105, %s106
    %p118 = scmp.eq.s32.totalorder %s21, 1
    %p119 = por %p117, %p118
    %p121 = scmp.ne.s32.totalorder %s106, %s120
    %p122 = scmp.eq.s32.totalorder %s21, 0
    %p123 = por %p121, %p122
    %s125 = sadd.s32 %s124, 1
    %p128 = scmp.eq.s32.totalorder %s15, 1
    %p129 = scmp.ne.s32.totalorder %s124, %s126
    %p130 = scmp.eq.s32.totalorder %s15, 0
    %p131 = por %p129, %p130
    %p132 = scmp.ne.s32.totalorder %s124, %s126
    %p133 = scmp.eq.s32.totalorder %s20, 1
    %p134 = por %p132, %p133
    %p135 = scmp.ne.s32.totalorder %s126, %s127
    %p136 = scmp.eq.s32.totalorder %s20, 0
    %p137 = por %p135, %p136
    %p138 = scmp.ne.s32.totalorder %s126, %s127
    %p139 = scmp.eq.s32.totalorder %s21, 1
    %p140 = por %p138, %p139
    %p142 = scmp.ne.s32.totalorder %s127, %s141
    %p143 = scmp.eq.s32.totalorder %s21, 0
    %p144 = por %p142, %p143
    %s146 = sadd.s32 %s145, 1
    %p149 = scmp.eq.s32.totalorder %s15, 1
    %p150 = scmp.ne.s32.totalorder %s145, %s147
    %p151 = scmp.eq.s32.totalorder %s15, 0
    %p152 = por %p150, %p151
    %p153 = scmp.ne.s32.totalorder %s145, %s147
    %p154 = scmp.eq.s32.totalorder %s20, 1
    %p155 = por %p153, %p154
    %p156 = scmp.ne.s32.totalorder %s147, %s148
    %p157 = scmp.eq.s32.totalorder %s20, 0
    %p158 = por %p156, %p157
    %p159 = scmp.ne.s32.totalorder %s147, %s148
    %p160 = scmp.eq.s32.totalorder %s21, 1
    %p161 = por %p159, %p160
    %p163 = scmp.ne.s32.totalorder %s148, %s162
    %p164 = scmp.eq.s32.totalorder %s21, 0
    %p165 = por %p163, %p164
    %s167 = sadd.s32 %s166, 1
    %p170 = scmp.eq.s32.totalorder %s15, 1
    %p171 = scmp.ne.s32.totalorder %s166, %s168
    %p172 = scmp.eq.s32.totalorder %s15, 0
    %p173 = por %p171, %p172
    %p174 = scmp.ne.s32.totalorder %s166, %s168
    %p175 = scmp.eq.s32.totalorder %s20, 1
    %p176 = por %p174, %p175
    %p177 = scmp.ne.s32.totalorder %s168, %s169
    %p178 = scmp.eq.s32.totalorder %s20, 0
    %p179 = por %p177, %p178
    %p180 = scmp.ne.s32.totalorder %s168, %s169
    %p181 = scmp.eq.s32.totalorder %s21, 1
    %p182 = por %p180, %p181
    %p184 = scmp.ne.s32.totalorder %s169, %s183
    %p185 = scmp.eq.s32.totalorder %s21, 0
    %p186 = por %p184, %p185
    %s188 = sadd.s32 %s187, 1
    %p191 = scmp.eq.s32.totalorder %s15, 1
    %p192 = scmp.ne.s32.totalorder %s187, %s189
    %p193 = scmp.eq.s32.totalorder %s15, 0
    %p194 = por %p192, %p193
    %p195 = scmp.ne.s32.totalorder %s187, %s189
    %p196 = scmp.eq.s32.totalorder %s20, 1
    %p197 = por %p195, %p196
    %p198 = scmp.ne.s32.totalorder %s189, %s190
    %p199 = scmp.eq.s32.totalorder %s20, 0
    %p200 = por %p198, %p199
    %p201 = scmp.ne.s32.totalorder %s189, %s190
    %p202 = scmp.eq.s32.totalorder %s21, 1
    %p203 = por %p201, %p202
    %p205 = scmp.ne.s32.totalorder %s190, %s204
    %p206 = scmp.eq.s32.totalorder %s21, 0
    %p207 = por %p205, %p206
    %s209 = sadd.s32 %s208, 1
    %p212 = scmp.eq.s32.totalorder %s15, 1
    %p213 = scmp.ne.s32.totalorder %s208, %s210
    %p214 = scmp.eq.s32.totalorder %s15, 0
    %p215 = por %p213, %p214
    %p216 = scmp.ne.s32.totalorder %s208, %s210
    %p217 = scmp.eq.s32.totalorder %s20, 1
    %p218 = por %p216, %p217
    %p219 = scmp.ne.s32.totalorder %s210, %s211
    %p220 = scmp.eq.s32.totalorder %s20, 0
    %p221 = por %p219, %p220
    %p222 = scmp.ne.s32.totalorder %s210, %s211
    %p223 = scmp.eq.s32.totalorder %s21, 1
    %p224 = por %p222, %p223
    %p226 = scmp.ne.s32.totalorder %s211, %s225
    %p227 = scmp.eq.s32.totalorder %s21, 0
    %p228 = por %p226, %p227
    %s229 = ssub.s32 %s23, %s30
    %p230 = scmp.eq.s32.totalorder %s229, 0
    %s232 = sadd.s32 %s231, 1
    %s233 = scalar_select %p230, %s231, %s232
    %p236 = pneg %p230
    %p237 = scmp.eq.s32.totalorder %s15, 1
    %p238 = por %p236, %p237
    %p239 = scmp.ne.s32.totalorder %s231, %s234
    %p240 = scmp.eq.s32.totalorder %s15, 0
    %p241 = por %p239, %p240
    %p242 = scmp.ne.s32.totalorder %s231, %s234
    %p243 = scmp.eq.s32.totalorder %s20, 1
    %p244 = por %p242, %p243
    %p245 = scmp.ne.s32.totalorder %s234, %s235
    %p246 = scmp.eq.s32.totalorder %s20, 0
    %p247 = por %p245, %p246
    %p248 = scmp.ne.s32.totalorder %s234, %s235
    %p249 = scmp.eq.s32.totalorder %s21, 1
    %p250 = por %p248, %p249
    %p252 = scmp.ne.s32.totalorder %s235, %s251
    %p253 = scmp.eq.s32.totalorder %s21, 0
    %p254 = por %p252, %p253
    %p255 = scmp.le.s32.totalorder 1, %s15
    %p256 = scmp.lt.s32.totalorder %s15, 3
    %p257 = pnand %p255, %p256
    %p258 = pneg %p257
    // Predicated region
    $region9: #{arma2_forward.1} parent=5 // pred_check
      _
    $region10: #{arma2_forward.1} parent=5 // pred_check_branch
      %260 = sbr.rel (%p257) target = $region12
    $region11: #{arma2_forward.1} parent=5 // pred_region
      %s261 = ssub.s32 %s15, 1
      // Predicated region
      $region13: #{arma2_forward.1} parent=11 // pred_check
        %p262 = pneg %p53
      $region14: #{arma2_forward.1} parent=11 // pred_check_branch
        %264 = sbr.rel (%p262) target = $region16
      $region15: #{arma2_forward.1} parent=11 // pred_region
        %s265 = smul.u32 16, %s25
        %p266 = scmp.lt.s32.totalorder %s265, 15
        %s267 = scalar_select %p266, %s265, 15
        %s268 = smul.addr %s267, 4
        %s269 = scalar_lea.vmem %s0, %s268
        %s270 = smul.u32 16, %s25
      $region16: #{arma2_forward.1} parent=11 // pred_fallthru
        _
      // Predicated region
      $region17: #{arma2_forward.1} parent=11 // pred_check
        %p271 = pneg %p74
      $region18: #{arma2_forward.1} parent=11 // pred_check_branch
        %273 = sbr.rel (%p271) target = $region20
      $region19: #{arma2_forward.1} parent=11 // pred_region
        _
      $region20: #{arma2_forward.1} parent=11 // pred_fallthru
        _
      // Predicated region
      $region21: #{arma2_forward.1} parent=11 // pred_check
        %p274 = pneg %p95
      $region22: #{arma2_forward.1} parent=11 // pred_check_branch
        %276 = sbr.rel (%p274) target = $region24
      $region23: #{arma2_forward.1} parent=11 // pred_region
        _
      $region24: #{arma2_forward.1} parent=11 // pred_fallthru
        _
      // Predicated region
      $region25: #{arma2_forward.1} parent=11 // pred_check
        %p277 = pneg %p116
      $region26: #{arma2_forward.1} parent=11 // pred_check_branch
        %279 = sbr.rel (%p277) target = $region28
      $region27: #{arma2_forward.1} parent=11 // pred_region
        _
      $region28: #{arma2_forward.1} parent=11 // pred_fallthru
        _
      // Predicated region
      $region29: #{arma2_forward.1} parent=11 // pred_check
        %p280 = pneg %p137
      $region30: #{arma2_forward.1} parent=11 // pred_check_branch
        %282 = sbr.rel (%p280) target = $region32
      $region31: #{arma2_forward.1} parent=11 // pred_region
        _
      $region32: #{arma2_forward.1} parent=11 // pred_fallthru
        _
      // Predicated region
      $region33: #{arma2_forward.1} parent=11 // pred_check
        %p283 = pneg %p158
      $region34: #{arma2_forward.1} parent=11 // pred_check_branch
        %285 = sbr.rel (%p283) target = $region36
      $region35: #{arma2_forward.1} parent=11 // pred_region
        _
      $region36: #{arma2_forward.1} parent=11 // pred_fallthru
        _
      // Predicated region
      $region37: #{arma2_forward.1} parent=11 // pred_check
        %p286 = pneg %p179
      $region38: #{arma2_forward.1} parent=11 // pred_check_branch
        %288 = sbr.rel (%p286) target = $region40
      $region39: #{arma2_forward.1} parent=11 // pred_region
        _
      $region40: #{arma2_forward.1} parent=11 // pred_fallthru
        _
      // Predicated region
      $region41: #{arma2_forward.1} parent=11 // pred_check
        %p289 = pneg %p200
      $region42: #{arma2_forward.1} parent=11 // pred_check_branch
        %291 = sbr.rel (%p289) target = $region44
      $region43: #{arma2_forward.1} parent=11 // pred_region
        _
      $region44: #{arma2_forward.1} parent=11 // pred_fallthru
        _
      // Predicated region
      $region45: #{arma2_forward.1} parent=11 // pred_check
        %p292 = pneg %p221
      $region46: #{arma2_forward.1} parent=11 // pred_check_branch
        %294 = sbr.rel (%p292) target = $region48
      $region47: #{arma2_forward.1} parent=11 // pred_region
        _
      $region48: #{arma2_forward.1} parent=11 // pred_fallthru
        _
    $region12: #{arma2_forward.1} parent=5 // pred_fallthru
      _
    %p295 = scmp.lt.s32.totalorder %s15, 2
    // Predicated region
    $region49: #{arma2_forward.1} parent=5 // pred_check
      %p296 = pneg %p295
    $region50: #{arma2_forward.1} parent=5 // pred_check_branch
      %298 = sbr.rel (%p296) target = $region52
    $region51: #{arma2_forward.1} parent=5 // pred_region
      _
    $region52: #{arma2_forward.1} parent=5 // pred_fallthru
      _
    %p299 = scmp.le.s32.totalorder 1, %s15
    %p300 = scmp.lt.s32.totalorder %s15, 3
    %p301 = pnand %p299, %p300
    %p302 = pneg %p301
    // Predicated region
    $region53: #{arma2_forward.1} parent=5 // pred_check
      _
    $region54: #{arma2_forward.1} parent=5 // pred_check_branch
      %304 = sbr.rel (%p301) target = $region56
    $region55: #{arma2_forward.1} parent=5 // pred_region
      %s305 = ssub.s32 %s15, 1
      %s306 = smul.u32 16, %s25
      %p307 = scmp.lt.s32.totalorder %s306, 15
      %s308 = scalar_select %p307, %s306, 15
      %s309 = smul.addr %s308, 4
      %s310 = scalar_lea.vmem %s0, %s309
      %p311 = pneg %p53
      %p312 = pneg %p50
      %p313 = pneg %p74
      %p314 = pneg %p71
      %p315 = pneg %p95
      %p316 = pneg %p92
      %p317 = pneg %p116
      %p318 = pneg %p113
      %p319 = pneg %p137
      %p320 = pneg %p134
      %p321 = pneg %p158
      %p322 = pneg %p155
      %p323 = pneg %p179
      %p324 = pneg %p176
      %p325 = pneg %p200
      %p326 = pneg %p197
      %p327 = pneg %p221
      %p328 = pneg %p218
      %p329 = pneg %p247
      %p330 = pneg %p244
      %s331 = smul.u32 16, %s25
      %p332 = scmp.lt.s32.totalorder %s331, 15
      %s333 = scalar_select %p332, %s331, 15
      %s334 = smul.addr %s333, 8
      %s335 = scalar_lea.vmem %s9, %s334
      %s336 = smul.u32 16, %s25
      %p337 = scmp.lt.s32.totalorder %s336, 15
      %s338 = scalar_select %p337, %s336, 15
      %s339 = smul.addr %s338, 4
      %s340 = scalar_lea.vmem %s0, %s339
      %s341 = smul.u32 16, %s25
      %s342 = smul.u32 16, %s25
      %p343 = scmp.lt.s32.totalorder %s342, 15
      %s344 = scalar_select %p343, %s342, 15
      %s345 = smul.addr %s344, 8
      %s346 = scalar_lea.vmem %s9, %s345
      %s347 = smul.u32 16, %s25
      %s349 = smul.u32 %s25, 128
      %v350 = vld [vmem:[%s340] sm:$0xf]
      %v351 = vld [vmem:[%s340 + $0x4] sm:$0xf]
      %v352 = vld [vmem:[%s340 + $0x8] sm:$0xf]
      %v353 = vld [vmem:[%s340 + $0xc] sm:$0xf]
      %v354 = vld [vmem:[%s340 + $0x10] sm:$0xf]
      %v355 = vld [vmem:[%s340 + $0x14] sm:$0xf]
      %v356 = vld [vmem:[%s340 + $0x18] sm:$0xf]
      %v357 = vld [vmem:[%s340 + $0x1c] sm:$0xf]
      %v358 = vld [vmem:[%s340 + $0x20] sm:$0xf]
      %v359 = vld [vmem:[%s340 + $0x24] sm:$0xf]
      %v360 = vld [vmem:[%s340 + $0x28] sm:$0xf]
      %v361 = vld [vmem:[%s340 + $0x2c] sm:$0xf]
      %v362 = vld [vmem:[%s340 + $0x30] sm:$0xf]
      %v363 = vld [vmem:[%s340 + $0x34] sm:$0xf]
      %v364 = vld [vmem:[%s340 + $0x38] sm:$0xf]
      %v365 = vld [vmem:[%s340 + $0x3c] sm:$0xf]
      %s366 = scalar_lea.vmem %s2, %s349
      %v367 = vld [vmem:[%s366] sm:$0xff]
      %v368 = vld [vmem:[%s366 + $0x8] sm:$0xff]
      %v369 = vld [vmem:[%s366 + $0x10] sm:$0xff]
      %v370 = vld [vmem:[%s366 + $0x18] sm:$0xff]
      %v371 = vld [vmem:[%s366 + $0x20] sm:$0xff]
      %v372 = vld [vmem:[%s366 + $0x28] sm:$0xff]
      %v373 = vld [vmem:[%s366 + $0x30] sm:$0xff]
      %v374 = vld [vmem:[%s366 + $0x38] sm:$0xff]
      %v375 = vld [vmem:[%s366 + $0x40] sm:$0xff]
      %v376 = vld [vmem:[%s366 + $0x48] sm:$0xff]
      %v377 = vld [vmem:[%s366 + $0x50] sm:$0xff]
      %v378 = vld [vmem:[%s366 + $0x58] sm:$0xff]
      %v379 = vld [vmem:[%s366 + $0x60] sm:$0xff]
      %v380 = vld [vmem:[%s366 + $0x68] sm:$0xff]
      %v381 = vld [vmem:[%s366 + $0x70] sm:$0xff]
      %v382 = vld [vmem:[%s366 + $0x78] sm:$0xff]
      %p383 = scmp.eq.s32.totalorder %s24, 0
      // Predicated region
      $region57: #{arma2_forward.1} parent=55 // pred_check
        %p384 = pneg %p383
      $region58: #{arma2_forward.1} parent=55 // pred_check_branch
        %386 = sbr.rel (%p384) target = $region60
      $region59: #{arma2_forward.1} parent=55 // pred_region
        %v387 = vld [vmem:[%s2] sm:$0xff]
        %v388 = vld [vmem:[%s2 + $0x8] sm:$0xff]
        %v389 = vld [vmem:[%s2 + $0x10] sm:$0xff]
        %v390 = vld [vmem:[%s2 + $0x18] sm:$0xff]
        %v391 = vld [vmem:[%s2 + $0x20] sm:$0xff]
        %v392 = vld [vmem:[%s2 + $0x28] sm:$0xff]
        %v393 = vld [vmem:[%s2 + $0x30] sm:$0xff]
        %v394 = vld [vmem:[%s2 + $0x38] sm:$0xff]
        %v395 = vld [vmem:[%s2 + $0x40] sm:$0xff]
        %v396 = vld [vmem:[%s2 + $0x48] sm:$0xff]
        %v397 = vld [vmem:[%s2 + $0x50] sm:$0xff]
        %v398 = vld [vmem:[%s2 + $0x58] sm:$0xff]
        %v399 = vld [vmem:[%s2 + $0x60] sm:$0xff]
        %v400 = vld [vmem:[%s2 + $0x68] sm:$0xff]
        %v401 = vld [vmem:[%s2 + $0x70] sm:$0xff]
        %v402 = vld [vmem:[%s2 + $0x78] sm:$0xff]
        %v403 = vld [vmem:[%s1] sm:$0xff]
        %v404 = vld [vmem:[%s1 + $0x8] sm:$0xff]
        %v405 = vld [vmem:[%s1 + $0x10] sm:$0xff]
        %v406 = vld [vmem:[%s1 + $0x18] sm:$0xff]
        %v407 = vld [vmem:[%s1 + $0x20] sm:$0xff]
        %v408 = vld [vmem:[%s1 + $0x28] sm:$0xff]
        %v409 = vld [vmem:[%s1 + $0x30] sm:$0xff]
        %v410 = vld [vmem:[%s1 + $0x38] sm:$0xff]
        %v411 = vld [vmem:[%s1 + $0x40] sm:$0xff]
        %v412 = vld [vmem:[%s1 + $0x48] sm:$0xff]
        %v413 = vld [vmem:[%s1 + $0x50] sm:$0xff]
        %v414 = vld [vmem:[%s1 + $0x58] sm:$0xff]
        %v415 = vld [vmem:[%s1 + $0x60] sm:$0xff]
        %v416 = vld [vmem:[%s1 + $0x68] sm:$0xff]
        %v417 = vld [vmem:[%s1 + $0x70] sm:$0xff]
        %v418 = vld [vmem:[%s1 + $0x78] sm:$0xff]
        %420 = vset.pattern.permute.xlu0 0
        %421 = vperm.xlu0 %420, %v387
        %v422 = vpop.permute.xlu0 %421
        %425 = vset.pattern.permute.xlu0 0
        %426 = vperm.xlu0 %425, %v388
        %v427 = vpop.permute.xlu0 %426
        %430 = vset.pattern.permute.xlu0 0
        %431 = vperm.xlu0 %430, %v389
        %v432 = vpop.permute.xlu0 %431
        %435 = vset.pattern.permute.xlu0 0
        %436 = vperm.xlu0 %435, %v390
        %v437 = vpop.permute.xlu0 %436
        %440 = vset.pattern.permute.xlu0 0
        %441 = vperm.xlu0 %440, %v391
        %v442 = vpop.permute.xlu0 %441
        %445 = vset.pattern.permute.xlu0 0
        %446 = vperm.xlu0 %445, %v392
        %v447 = vpop.permute.xlu0 %446
        %450 = vset.pattern.permute.xlu0 0
        %451 = vperm.xlu0 %450, %v393
        %v452 = vpop.permute.xlu0 %451
        %455 = vset.pattern.permute.xlu0 0
        %456 = vperm.xlu0 %455, %v394
        %v457 = vpop.permute.xlu0 %456
        %460 = vset.pattern.permute.xlu0 0
        %461 = vperm.xlu0 %460, %v395
        %v462 = vpop.permute.xlu0 %461
        %465 = vset.pattern.permute.xlu0 0
        %466 = vperm.xlu0 %465, %v396
        %v467 = vpop.permute.xlu0 %466
        %470 = vset.pattern.permute.xlu0 0
        %471 = vperm.xlu0 %470, %v397
        %v472 = vpop.permute.xlu0 %471
        %475 = vset.pattern.permute.xlu0 0
        %476 = vperm.xlu0 %475, %v398
        %v477 = vpop.permute.xlu0 %476
        %480 = vset.pattern.permute.xlu0 0
        %481 = vperm.xlu0 %480, %v399
        %v482 = vpop.permute.xlu0 %481
        %485 = vset.pattern.permute.xlu0 0
        %486 = vperm.xlu0 %485, %v400
        %v487 = vpop.permute.xlu0 %486
        %490 = vset.pattern.permute.xlu0 0
        %491 = vperm.xlu0 %490, %v401
        %v492 = vpop.permute.xlu0 %491
        %495 = vset.pattern.permute.xlu0 0
        %496 = vperm.xlu0 %495, %v402
        %v497 = vpop.permute.xlu0 %496
        %v499 = vmul.f32 %v422, %v403
        %v500 = vmul.f32 %v427, %v404
        %v501 = vmul.f32 %v432, %v405
        %v502 = vmul.f32 %v437, %v406
        %v503 = vmul.f32 %v442, %v407
        %v504 = vmul.f32 %v447, %v408
        %v505 = vmul.f32 %v452, %v409
        %v506 = vmul.f32 %v457, %v410
        %v507 = vmul.f32 %v462, %v411
        %v508 = vmul.f32 %v467, %v412
        %v509 = vmul.f32 %v472, %v413
        %v510 = vmul.f32 %v477, %v414
        %v511 = vmul.f32 %v482, %v415
        %v512 = vmul.f32 %v487, %v416
        %v513 = vmul.f32 %v492, %v417
        %v514 = vmul.f32 %v497, %v418
        %v515 = vpack.c.bf16 %v500, %v499
        %v516 = vpack.c.bf16 %v502, %v501
        %v517 = vpack.c.bf16 %v504, %v503
        %v518 = vpack.c.bf16 %v506, %v505
        %v519 = vpack.c.bf16 %v508, %v507
        %v520 = vpack.c.bf16 %v510, %v509
        %v521 = vpack.c.bf16 %v512, %v511
        %v522 = vpack.c.bf16 %v514, %v513
        %v539 = vunpack.c.l.b16 %v350
        %v540 = vunpack.c.l.b16 %v351
        %v541 = vunpack.c.l.b16 %v352
        %v542 = vunpack.c.l.b16 %v353
        %v543 = vunpack.c.l.b16 %v354
        %v544 = vunpack.c.l.b16 %v355
        %v545 = vunpack.c.l.b16 %v356
        %v546 = vunpack.c.l.b16 %v357
        %v547 = vunpack.c.l.b16 %v358
        %v548 = vunpack.c.l.b16 %v359
        %v549 = vunpack.c.l.b16 %v360
        %v550 = vunpack.c.l.b16 %v361
        %v551 = vunpack.c.l.b16 %v362
        %v552 = vunpack.c.l.b16 %v363
        %v553 = vunpack.c.l.b16 %v364
        %v554 = vunpack.c.l.b16 %v365
        %v555 = vpack.c.b16 %v540, %v539
        %v556 = vpack.c.b16 %v542, %v541
        %v557 = vpack.c.b16 %v544, %v543
        %v558 = vpack.c.b16 %v546, %v545
        %v559 = vpack.c.b16 %v548, %v547
        %v560 = vpack.c.b16 %v550, %v549
        %v561 = vpack.c.b16 %v552, %v551
        %v562 = vpack.c.b16 %v554, %v553
        %571 = vmatprep.subr.bf16.mxu0 0
        %572 = vmatpush1.bf16.msra.mxu0 %v522
        %573 = vmatprep.subr.bf16.mxu0 0
        %574 = vmatpush1.bf16.msra.mxu0 %v521
        %575 = vmatprep.subr.bf16.mxu0 0
        %576 = vmatpush1.bf16.msra.mxu0 %v520
        %577 = vmatprep.subr.bf16.mxu0 0
        %578 = vmatpush1.bf16.msra.mxu0 %v519
        %579 = vmatprep.subr.bf16.mxu0 0
        %580 = vmatpush1.bf16.msra.mxu0 %v518
        %581 = vmatprep.subr.bf16.mxu0 0
        %582 = vmatpush1.bf16.msra.mxu0 %v517
        %583 = vmatprep.subr.bf16.mxu0 0
        %584 = vmatpush1.bf16.msra.mxu0 %v516
        %585 = vmatprep.subr.bf16.mxu0 0
        %586 = vmatpush1.bf16.msra.mxu0 %v515
        %587 = vmatprep.subr.bf16.mxu0 0
        %588 = vmatpush2.bf16.msra.mxu0 0
        %589 = vmatprep.subr.bf16.mxu0 0
        %590 = vmatpush2.bf16.msra.mxu0 0
        %591 = vmatprep.subr.bf16.mxu0 0
        %592 = vmatpush2.bf16.msra.mxu0 0
        %593 = vmatprep.subr.bf16.mxu0 0
        %594 = vmatpush2.bf16.msra.mxu0 0
        %595 = vmatprep.subr.bf16.mxu0 0
        %596 = vmatpush2.bf16.msra.mxu0 0
        %597 = vmatprep.subr.bf16.mxu0 0
        %598 = vmatpush2.bf16.msra.mxu0 0
        %599 = vmatprep.subr.bf16.mxu0 0
        %600 = vmatpush2.bf16.msra.mxu0 0
        %601 = vmatprep.subr.bf16.mxu0 0
        %602 = vmatpush2.bf16.msra.mxu0 0
        %603 = vmatprep.mubr.bf16.mxu0 0
        %604 = vmatmul.mubr.bf16.gmra.mxu0 %v555
        %v605 = vpop.f32.mrf.mxu0
        %v606 = vadd.f32 0.0, %v605
        %v607 = vpop.f32.mrf.mxu0
        %v608 = vpop.f32.mrf.mxu0
        %v609 = vadd.f32 0.0, %v608
        %v610 = vpop.f32.mrf.mxu0
        %611 = vmatprep.mubr.bf16.mxu0 0
        %612 = vmatmul.mubr.bf16.gmra.mxu0 %v556
        %v613 = vpop.f32.mrf.mxu0
        %v614 = vadd.f32 0.0, %v613
        %v615 = vpop.f32.mrf.mxu0
        %v616 = vpop.f32.mrf.mxu0
        %v617 = vadd.f32 0.0, %v616
        %v618 = vpop.f32.mrf.mxu0
        %619 = vmatprep.mubr.bf16.mxu0 0
        %620 = vmatmul.mubr.bf16.gmra.mxu0 %v557
        %v621 = vpop.f32.mrf.mxu0
        %v622 = vadd.f32 0.0, %v621
        %v623 = vpop.f32.mrf.mxu0
        %v624 = vpop.f32.mrf.mxu0
        %v625 = vadd.f32 0.0, %v624
        %v626 = vpop.f32.mrf.mxu0
        %627 = vmatprep.mubr.bf16.mxu0 0
        %628 = vmatmul.mubr.bf16.gmra.mxu0 %v558
        %v629 = vpop.f32.mrf.mxu0
        %v630 = vadd.f32 0.0, %v629
        %v631 = vpop.f32.mrf.mxu0
        %v632 = vpop.f32.mrf.mxu0
        %v633 = vadd.f32 0.0, %v632
        %v634 = vpop.f32.mrf.mxu0
        %635 = vmatprep.mubr.bf16.mxu0 0
        %636 = vmatmul.mubr.bf16.gmra.mxu0 %v559
        %v637 = vpop.f32.mrf.mxu0
        %v638 = vadd.f32 0.0, %v637
        %v639 = vpop.f32.mrf.mxu0
        %v640 = vpop.f32.mrf.mxu0
        %v641 = vadd.f32 0.0, %v640
        %v642 = vpop.f32.mrf.mxu0
        %643 = vmatprep.mubr.bf16.mxu0 0
        %644 = vmatmul.mubr.bf16.gmra.mxu0 %v560
        %v645 = vpop.f32.mrf.mxu0
        %v646 = vadd.f32 0.0, %v645
        %v647 = vpop.f32.mrf.mxu0
        %v648 = vpop.f32.mrf.mxu0
        %v649 = vadd.f32 0.0, %v648
        %v650 = vpop.f32.mrf.mxu0
        %651 = vmatprep.mubr.bf16.mxu0 0
        %652 = vmatmul.mubr.bf16.gmra.mxu0 %v561
        %v653 = vpop.f32.mrf.mxu0
        %v654 = vadd.f32 0.0, %v653
        %v655 = vpop.f32.mrf.mxu0
        %v656 = vpop.f32.mrf.mxu0
        %v657 = vadd.f32 0.0, %v656
        %v658 = vpop.f32.mrf.mxu0
        %659 = vmatprep.mubr.bf16.mxu0 0
        %660 = vmatmul.mubr.bf16.gmra.mxu0 %v562
        %v661 = vpop.f32.mrf.mxu0
        %v662 = vadd.f32 0.0, %v661
        %v663 = vpop.f32.mrf.mxu0
        %v664 = vpop.f32.mrf.mxu0
        %v665 = vadd.f32 0.0, %v664
        %v666 = vpop.f32.mrf.mxu0
        %667 = vdwg.mxu0
        %669 = vset.pattern.permute.xlu0 0
        %670 = vperm.xlu0 %669, %v367
        %v671 = vpop.permute.xlu0 %670
        %674 = vset.pattern.permute.xlu0 0
        %675 = vperm.xlu0 %674, %v368
        %v676 = vpop.permute.xlu0 %675
        %679 = vset.pattern.permute.xlu0 0
        %680 = vperm.xlu0 %679, %v369
        %v681 = vpop.permute.xlu0 %680
        %684 = vset.pattern.permute.xlu0 0
        %685 = vperm.xlu0 %684, %v370
        %v686 = vpop.permute.xlu0 %685
        %689 = vset.pattern.permute.xlu0 0
        %690 = vperm.xlu0 %689, %v371
        %v691 = vpop.permute.xlu0 %690
        %694 = vset.pattern.permute.xlu0 0
        %695 = vperm.xlu0 %694, %v372
        %v696 = vpop.permute.xlu0 %695
        %699 = vset.pattern.permute.xlu0 0
        %700 = vperm.xlu0 %699, %v373
        %v701 = vpop.permute.xlu0 %700
        %704 = vset.pattern.permute.xlu0 0
        %705 = vperm.xlu0 %704, %v374
        %v706 = vpop.permute.xlu0 %705
        %709 = vset.pattern.permute.xlu0 0
        %710 = vperm.xlu0 %709, %v375
        %v711 = vpop.permute.xlu0 %710
        %714 = vset.pattern.permute.xlu0 0
        %715 = vperm.xlu0 %714, %v376
        %v716 = vpop.permute.xlu0 %715
        %719 = vset.pattern.permute.xlu0 0
        %720 = vperm.xlu0 %719, %v377
        %v721 = vpop.permute.xlu0 %720
        %724 = vset.pattern.permute.xlu0 0
        %725 = vperm.xlu0 %724, %v378
        %v726 = vpop.permute.xlu0 %725
        %729 = vset.pattern.permute.xlu0 0
        %730 = vperm.xlu0 %729, %v379
        %v731 = vpop.permute.xlu0 %730
        %734 = vset.pattern.permute.xlu0 0
        %735 = vperm.xlu0 %734, %v380
        %v736 = vpop.permute.xlu0 %735
        %739 = vset.pattern.permute.xlu0 0
        %740 = vperm.xlu0 %739, %v381
        %v741 = vpop.permute.xlu0 %740
        %744 = vset.pattern.permute.xlu0 0
        %745 = vperm.xlu0 %744, %v382
        %v746 = vpop.permute.xlu0 %745
        %v748 = vmul.f32 %v671, %v606
        %v749 = vmul.f32 %v676, %v609
        %v750 = vmul.f32 %v681, %v614
        %v751 = vmul.f32 %v686, %v617
        %v752 = vmul.f32 %v691, %v622
        %v753 = vmul.f32 %v696, %v625
        %v754 = vmul.f32 %v701, %v630
        %v755 = vmul.f32 %v706, %v633
        %v756 = vmul.f32 %v711, %v638
        %v757 = vmul.f32 %v716, %v641
        %v758 = vmul.f32 %v721, %v646
        %v759 = vmul.f32 %v726, %v649
        %v760 = vmul.f32 %v731, %v654
        %v761 = vmul.f32 %v736, %v657
        %v762 = vmul.f32 %v741, %v662
        %v763 = vmul.f32 %v746, %v665
        %s764 = scalar_lea.vmem %s1, %s349
        %v765 = vld [vmem:[%s764] sm:$0xff]
        %v766 = vld [vmem:[%s764 + $0x8] sm:$0xff]
        %v767 = vld [vmem:[%s764 + $0x10] sm:$0xff]
        %v768 = vld [vmem:[%s764 + $0x18] sm:$0xff]
        %v769 = vld [vmem:[%s764 + $0x20] sm:$0xff]
        %v770 = vld [vmem:[%s764 + $0x28] sm:$0xff]
        %v771 = vld [vmem:[%s764 + $0x30] sm:$0xff]
        %v772 = vld [vmem:[%s764 + $0x38] sm:$0xff]
        %v773 = vld [vmem:[%s764 + $0x40] sm:$0xff]
        %v774 = vld [vmem:[%s764 + $0x48] sm:$0xff]
        %v775 = vld [vmem:[%s764 + $0x50] sm:$0xff]
        %v776 = vld [vmem:[%s764 + $0x58] sm:$0xff]
        %v777 = vld [vmem:[%s764 + $0x60] sm:$0xff]
        %v778 = vld [vmem:[%s764 + $0x68] sm:$0xff]
        %v779 = vld [vmem:[%s764 + $0x70] sm:$0xff]
        %v780 = vld [vmem:[%s764 + $0x78] sm:$0xff]
        %v781 = vld [vmem:[%s3] sm:$0xff]
        %v782 = vld [vmem:[%s3 + $0x8] sm:$0xff]
        %v783 = vld [vmem:[%s3 + $0x10] sm:$0xff]
        %v784 = vld [vmem:[%s3 + $0x18] sm:$0xff]
        %v785 = vld [vmem:[%s4] sm:$0xff]
        %v786 = vld [vmem:[%s4 + $0x8] sm:$0xff]
        %v787 = vld [vmem:[%s4 + $0x10] sm:$0xff]
        %v788 = vld [vmem:[%s4 + $0x18] sm:$0xff]
        %vm789 = vcmask 261120
        %v791 = vsel %vm789, %v765, 0
        %v794 = vsel %vm789, %v766, 0
        %v797 = vsel %vm789, %v767, 0
        %v800 = vsel %vm789, %v768, 0
        %v803 = vsel %vm789, %v769, 0
        %v806 = vsel %vm789, %v770, 0
        %v809 = vsel %vm789, %v771, 0
        %v812 = vsel %vm789, %v772, 0
        %v815 = vsel %vm789, %v773, 0
        %v818 = vsel %vm789, %v774, 0
        %v821 = vsel %vm789, %v775, 0
        %v824 = vsel %vm789, %v776, 0
        %v827 = vsel %vm789, %v777, 0
        %v830 = vsel %vm789, %v778, 0
        %v833 = vsel %vm789, %v779, 0
        %v836 = vsel %vm789, %v780, 0
        %838 = vmatprep.subr.mxu0 0.0
        %839 = vmatpush1.msra.mxu0 0.0
        %840 = vmatprep.subr.mxu0 0.0
        %841 = vmatpush1.msra.mxu0 0.0
        %842 = vmatprep.subr.mxu0 0.0
        %843 = vmatpush1.msra.mxu0 0.0
        %844 = vmatprep.subr.mxu0 0.0
        %845 = vmatpush1.msra.mxu0 0.0
        %846 = vmatprep.subr.mxu0 0.0
        %847 = vmatpush1.msra.mxu0 0.0
        %848 = vmatprep.subr.mxu0 0.0
        %849 = vmatpush1.msra.mxu0 0.0
        %850 = vmatprep.subr.mxu0 0.0
        %851 = vmatpush1.msra.mxu0 0.0
        %852 = vmatprep.subr.mxu0 0.0
        %853 = vmatpush1.msra.mxu0 0.0
        %854 = vmatprep.subr.mxu0 0.0
        %855 = vmatpush1.msra.mxu0 0.0
        %856 = vmatprep.subr.mxu0 0.0
        %857 = vmatpush1.msra.mxu0 0.0
        %858 = vmatprep.subr.mxu0 0.0
        %859 = vmatpush1.msra.mxu0 0.0
        %860 = vmatprep.subr.mxu0 0.0
        %861 = vmatpush1.msra.mxu0 0.0
        %862 = vmatprep.subr.mxu0 0.0
        %863 = vmatpush1.msra.mxu0 %v788
        %864 = vmatprep.subr.mxu0 0.0
        %865 = vmatpush1.msra.mxu0 %v787
        %866 = vmatprep.subr.mxu0 0.0
        %867 = vmatpush1.msra.mxu0 %v786
        %868 = vmatprep.subr.mxu0 0.0
        %869 = vmatpush1.msra.mxu0 %v785
        %870 = vmatprep.subr.mxu0 0.0
        %871 = vmatpush2.msra.mxu0 0.0
        %872 = vmatprep.subr.mxu0 0.0
        %873 = vmatpush2.msra.mxu0 0.0
        %874 = vmatprep.subr.mxu0 0.0
        %875 = vmatpush2.msra.mxu0 0.0
        %876 = vmatprep.subr.mxu0 0.0
        %877 = vmatpush2.msra.mxu0 0.0
        %878 = vmatprep.subr.mxu0 0.0
        %879 = vmatpush2.msra.mxu0 0.0
        %880 = vmatprep.subr.mxu0 0.0
        %881 = vmatpush2.msra.mxu0 0.0
        %882 = vmatprep.subr.mxu0 0.0
        %883 = vmatpush2.msra.mxu0 0.0
        %884 = vmatprep.subr.mxu0 0.0
        %885 = vmatpush2.msra.mxu0 0.0
        %886 = vmatprep.subr.mxu0 0.0
        %887 = vmatpush2.msra.mxu0 0.0
        %888 = vmatprep.subr.mxu0 0.0
        %889 = vmatpush2.msra.mxu0 0.0
        %890 = vmatprep.subr.mxu0 0.0
        %891 = vmatpush2.msra.mxu0 0.0
        %892 = vmatprep.subr.mxu0 0.0
        %893 = vmatpush2.msra.mxu0 0.0
        %894 = vmatprep.subr.mxu0 0.0
        %895 = vmatpush2.msra.mxu0 0.0
        %896 = vmatprep.subr.mxu0 0.0
        %897 = vmatpush2.msra.mxu0 0.0
        %898 = vmatprep.subr.mxu0 0.0
        %899 = vmatpush2.msra.mxu0 0.0
        %900 = vmatprep.subr.mxu0 0.0
        %901 = vmatpush2.msra.mxu0 0.0
        %902 = vmatprep.mubr.f32.mxu0 0.0
        %903 = vmatmul.mubr.f32.gmra.mxu0 %v791
        %v904 = vpop.f32.mrf.mxu0
        %v905 = vadd.f32 0.0, %v904
        %v906 = vpop.f32.mrf.mxu0
        %907 = vmatprep.mubr.f32.mxu0 0.0
        %908 = vmatmul.mubr.f32.gmra.mxu0 %v794
        %v909 = vpop.f32.mrf.mxu0
        %v910 = vadd.f32 0.0, %v909
        %v911 = vpop.f32.mrf.mxu0
        %912 = vmatprep.mubr.f32.mxu0 0.0
        %913 = vmatmul.mubr.f32.gmra.mxu0 %v797
        %v914 = vpop.f32.mrf.mxu0
        %v915 = vadd.f32 0.0, %v914
        %v916 = vpop.f32.mrf.mxu0
        %917 = vmatprep.mubr.f32.mxu0 0.0
        %918 = vmatmul.mubr.f32.gmra.mxu0 %v800
        %v919 = vpop.f32.mrf.mxu0
        %v920 = vadd.f32 0.0, %v919
        %v921 = vpop.f32.mrf.mxu0
        %922 = vmatprep.mubr.f32.mxu0 0.0
        %923 = vmatmul.mubr.f32.gmra.mxu0 %v803
        %v924 = vpop.f32.mrf.mxu0
        %v925 = vadd.f32 0.0, %v924
        %v926 = vpop.f32.mrf.mxu0
        %927 = vmatprep.mubr.f32.mxu0 0.0
        %928 = vmatmul.mubr.f32.gmra.mxu0 %v806
        %v929 = vpop.f32.mrf.mxu0
        %v930 = vadd.f32 0.0, %v929
        %v931 = vpop.f32.mrf.mxu0
        %932 = vmatprep.mubr.f32.mxu0 0.0
        %933 = vmatmul.mubr.f32.gmra.mxu0 %v809
        %v934 = vpop.f32.mrf.mxu0
        %v935 = vadd.f32 0.0, %v934
        %v936 = vpop.f32.mrf.mxu0
        %937 = vmatprep.mubr.f32.mxu0 0.0
        %938 = vmatmul.mubr.f32.gmra.mxu0 %v812
        %v939 = vpop.f32.mrf.mxu0
        %v940 = vadd.f32 0.0, %v939
        %v941 = vpop.f32.mrf.mxu0
        %942 = vmatprep.mubr.f32.mxu0 0.0
        %943 = vmatmul.mubr.f32.gmra.mxu0 %v815
        %v944 = vpop.f32.mrf.mxu0
        %v945 = vadd.f32 0.0, %v944
        %v946 = vpop.f32.mrf.mxu0
        %947 = vmatprep.mubr.f32.mxu0 0.0
        %948 = vmatmul.mubr.f32.gmra.mxu0 %v818
        %v949 = vpop.f32.mrf.mxu0
        %v950 = vadd.f32 0.0, %v949
        %v951 = vpop.f32.mrf.mxu0
        %952 = vmatprep.mubr.f32.mxu0 0.0
        %953 = vmatmul.mubr.f32.gmra.mxu0 %v821
        %v954 = vpop.f32.mrf.mxu0
        %v955 = vadd.f32 0.0, %v954
        %v956 = vpop.f32.mrf.mxu0
        %957 = vmatprep.mubr.f32.mxu0 0.0
        %958 = vmatmul.mubr.f32.gmra.mxu0 %v824
        %v959 = vpop.f32.mrf.mxu0
        %v960 = vadd.f32 0.0, %v959
        %v961 = vpop.f32.mrf.mxu0
        %962 = vmatprep.mubr.f32.mxu0 0.0
        %963 = vmatmul.mubr.f32.gmra.mxu0 %v827
        %v964 = vpop.f32.mrf.mxu0
        %v965 = vadd.f32 0.0, %v964
        %v966 = vpop.f32.mrf.mxu0
        %967 = vmatprep.mubr.f32.mxu0 0.0
        %968 = vmatmul.mubr.f32.gmra.mxu0 %v830
        %v969 = vpop.f32.mrf.mxu0
        %v970 = vadd.f32 0.0, %v969
        %v971 = vpop.f32.mrf.mxu0
        %972 = vmatprep.mubr.f32.mxu0 0.0
        %973 = vmatmul.mubr.f32.gmra.mxu0 %v833
        %v974 = vpop.f32.mrf.mxu0
        %v975 = vadd.f32 0.0, %v974
        %v976 = vpop.f32.mrf.mxu0
        %977 = vmatprep.mubr.f32.mxu0 0.0
        %978 = vmatmul.mubr.f32.gmra.mxu0 %v836
        %v979 = vpop.f32.mrf.mxu0
        %v980 = vadd.f32 0.0, %v979
        %v981 = vpop.f32.mrf.mxu0
        %982 = vdwg.mxu0
        %v984 = vsel %vm789, %v748, 0
        %v987 = vsel %vm789, %v749, 0
        %v990 = vsel %vm789, %v750, 0
        %v993 = vsel %vm789, %v751, 0
        %v996 = vsel %vm789, %v752, 0
        %v999 = vsel %vm789, %v753, 0
        %v1002 = vsel %vm789, %v754, 0
        %v1005 = vsel %vm789, %v755, 0
        %v1008 = vsel %vm789, %v756, 0
        %v1011 = vsel %vm789, %v757, 0
        %v1014 = vsel %vm789, %v758, 0
        %v1017 = vsel %vm789, %v759, 0
        %v1020 = vsel %vm789, %v760, 0
        %v1023 = vsel %vm789, %v761, 0
        %v1026 = vsel %vm789, %v762, 0
        %v1029 = vsel %vm789, %v763, 0
        %1031 = vmatprep.subr.mxu0 0.0
        %1032 = vmatpush1.msra.mxu0 0.0
        %1033 = vmatprep.subr.mxu0 0.0
        %1034 = vmatpush1.msra.mxu0 0.0
        %1035 = vmatprep.subr.mxu0 0.0
        %1036 = vmatpush1.msra.mxu0 0.0
        %1037 = vmatprep.subr.mxu0 0.0
        %1038 = vmatpush1.msra.mxu0 0.0
        %1039 = vmatprep.subr.mxu0 0.0
        %1040 = vmatpush1.msra.mxu0 0.0
        %1041 = vmatprep.subr.mxu0 0.0
        %1042 = vmatpush1.msra.mxu0 0.0
        %1043 = vmatprep.subr.mxu0 0.0
        %1044 = vmatpush1.msra.mxu0 0.0
        %1045 = vmatprep.subr.mxu0 0.0
        %1046 = vmatpush1.msra.mxu0 0.0
        %1047 = vmatprep.subr.mxu0 0.0
        %1048 = vmatpush1.msra.mxu0 0.0
        %1049 = vmatprep.subr.mxu0 0.0
        %1050 = vmatpush1.msra.mxu0 0.0
        %1051 = vmatprep.subr.mxu0 0.0
        %1052 = vmatpush1.msra.mxu0 0.0
        %1053 = vmatprep.subr.mxu0 0.0
        %1054 = vmatpush1.msra.mxu0 0.0
        %1055 = vmatprep.subr.mxu0 0.0
        %1056 = vmatpush1.msra.mxu0 %v784
        %1057 = vmatprep.subr.mxu0 0.0
        %1058 = vmatpush1.msra.mxu0 %v783
        %1059 = vmatprep.subr.mxu0 0.0
        %1060 = vmatpush1.msra.mxu0 %v782
        %1061 = vmatprep.subr.mxu0 0.0
        %1062 = vmatpush1.msra.mxu0 %v781
        %1063 = vmatprep.subr.mxu0 0.0
        %1064 = vmatpush2.msra.mxu0 0.0
        %1065 = vmatprep.subr.mxu0 0.0
        %1066 = vmatpush2.msra.mxu0 0.0
        %1067 = vmatprep.subr.mxu0 0.0
        %1068 = vmatpush2.msra.mxu0 0.0
        %1069 = vmatprep.subr.mxu0 0.0
        %1070 = vmatpush2.msra.mxu0 0.0
        %1071 = vmatprep.subr.mxu0 0.0
        %1072 = vmatpush2.msra.mxu0 0.0
        %1073 = vmatprep.subr.mxu0 0.0
        %1074 = vmatpush2.msra.mxu0 0.0
        %1075 = vmatprep.subr.mxu0 0.0
        %1076 = vmatpush2.msra.mxu0 0.0
        %1077 = vmatprep.subr.mxu0 0.0
        %1078 = vmatpush2.msra.mxu0 0.0
        %1079 = vmatprep.subr.mxu0 0.0
        %1080 = vmatpush2.msra.mxu0 0.0
        %1081 = vmatprep.subr.mxu0 0.0
        %1082 = vmatpush2.msra.mxu0 0.0
        %1083 = vmatprep.subr.mxu0 0.0
        %1084 = vmatpush2.msra.mxu0 0.0
        %1085 = vmatprep.subr.mxu0 0.0
        %1086 = vmatpush2.msra.mxu0 0.0
        %1087 = vmatprep.subr.mxu0 0.0
        %1088 = vmatpush2.msra.mxu0 0.0
        %1089 = vmatprep.subr.mxu0 0.0
        %1090 = vmatpush2.msra.mxu0 0.0
        %1091 = vmatprep.subr.mxu0 0.0
        %1092 = vmatpush2.msra.mxu0 0.0
        %1093 = vmatprep.subr.mxu0 0.0
        %1094 = vmatpush2.msra.mxu0 0.0
        %1095 = vmatprep.mubr.f32.mxu0 0.0
        %1096 = vmatmul.mubr.f32.gmra.mxu0 %v984
        %v1097 = vpop.f32.mrf.mxu0
        %v1098 = vadd.f32 %v905, %v1097
        %v1099 = vpop.f32.mrf.mxu0
        %1100 = vmatprep.mubr.f32.mxu0 0.0
        %1101 = vmatmul.mubr.f32.gmra.mxu0 %v987
        %v1102 = vpop.f32.mrf.mxu0
        %v1103 = vadd.f32 %v910, %v1102
        %v1104 = vpop.f32.mrf.mxu0
        %1105 = vmatprep.mubr.f32.mxu0 0.0
        %1106 = vmatmul.mubr.f32.gmra.mxu0 %v990
        %v1107 = vpop.f32.mrf.mxu0
        %v1108 = vadd.f32 %v915, %v1107
        %v1109 = vpop.f32.mrf.mxu0
        %1110 = vmatprep.mubr.f32.mxu0 0.0
        %1111 = vmatmul.mubr.f32.gmra.mxu0 %v993
        %v1112 = vpop.f32.mrf.mxu0
        %v1113 = vadd.f32 %v920, %v1112
        %v1114 = vpop.f32.mrf.mxu0
        %1115 = vmatprep.mubr.f32.mxu0 0.0
        %1116 = vmatmul.mubr.f32.gmra.mxu0 %v996
        %v1117 = vpop.f32.mrf.mxu0
        %v1118 = vadd.f32 %v925, %v1117
        %v1119 = vpop.f32.mrf.mxu0
        %1120 = vmatprep.mubr.f32.mxu0 0.0
        %1121 = vmatmul.mubr.f32.gmra.mxu0 %v999
        %v1122 = vpop.f32.mrf.mxu0
        %v1123 = vadd.f32 %v930, %v1122
        %v1124 = vpop.f32.mrf.mxu0
        %1125 = vmatprep.mubr.f32.mxu0 0.0
        %1126 = vmatmul.mubr.f32.gmra.mxu0 %v1002
        %v1127 = vpop.f32.mrf.mxu0
        %v1128 = vadd.f32 %v935, %v1127
        %v1129 = vpop.f32.mrf.mxu0
        %1130 = vmatprep.mubr.f32.mxu0 0.0
        %1131 = vmatmul.mubr.f32.gmra.mxu0 %v1005
        %v1132 = vpop.f32.mrf.mxu0
        %v1133 = vadd.f32 %v940, %v1132
        %v1134 = vpop.f32.mrf.mxu0
        %1135 = vmatprep.mubr.f32.mxu0 0.0
        %1136 = vmatmul.mubr.f32.gmra.mxu0 %v1008
        %v1137 = vpop.f32.mrf.mxu0
        %v1138 = vadd.f32 %v945, %v1137
        %v1139 = vpop.f32.mrf.mxu0
        %1140 = vmatprep.mubr.f32.mxu0 0.0
        %1141 = vmatmul.mubr.f32.gmra.mxu0 %v1011
        %v1142 = vpop.f32.mrf.mxu0
        %v1143 = vadd.f32 %v950, %v1142
        %v1144 = vpop.f32.mrf.mxu0
        %1145 = vmatprep.mubr.f32.mxu0 0.0
        %1146 = vmatmul.mubr.f32.gmra.mxu0 %v1014
        %v1147 = vpop.f32.mrf.mxu0
        %v1148 = vadd.f32 %v955, %v1147
        %v1149 = vpop.f32.mrf.mxu0
        %1150 = vmatprep.mubr.f32.mxu0 0.0
        %1151 = vmatmul.mubr.f32.gmra.mxu0 %v1017
        %v1152 = vpop.f32.mrf.mxu0
        %v1153 = vadd.f32 %v960, %v1152
        %v1154 = vpop.f32.mrf.mxu0
        %1155 = vmatprep.mubr.f32.mxu0 0.0
        %1156 = vmatmul.mubr.f32.gmra.mxu0 %v1020
        %v1157 = vpop.f32.mrf.mxu0
        %v1158 = vadd.f32 %v965, %v1157
        %v1159 = vpop.f32.mrf.mxu0
        %1160 = vmatprep.mubr.f32.mxu0 0.0
        %1161 = vmatmul.mubr.f32.gmra.mxu0 %v1023
        %v1162 = vpop.f32.mrf.mxu0
        %v1163 = vadd.f32 %v970, %v1162
        %v1164 = vpop.f32.mrf.mxu0
        %1165 = vmatprep.mubr.f32.mxu0 0.0
        %1166 = vmatmul.mubr.f32.gmra.mxu0 %v1026
        %v1167 = vpop.f32.mrf.mxu0
        %v1168 = vadd.f32 %v975, %v1167
        %v1169 = vpop.f32.mrf.mxu0
        %1170 = vmatprep.mubr.f32.mxu0 0.0
        %1171 = vmatmul.mubr.f32.gmra.mxu0 %v1029
        %v1172 = vpop.f32.mrf.mxu0
        %v1173 = vadd.f32 %v980, %v1172
        %v1174 = vpop.f32.mrf.mxu0
        %1175 = vdwg.mxu0
        %v1176 = vld [vmem:[%s5] sm:$0x1]
        %v1178 = vlaneseq
        %v1179 = vshrl.u32 %v1178, 7
        %v1180 = vsub.s32 0, %v1179
        %v1181 = vrot.slane %v1176, %v1180
        %v1183 = vadd.f32 %v1098, %v1181
        %v1184 = vadd.f32 %v1103, %v1181
        %v1185 = vadd.f32 %v1108, %v1181
        %v1186 = vadd.f32 %v1113, %v1181
        %v1187 = vadd.f32 %v1118, %v1181
        %v1188 = vadd.f32 %v1123, %v1181
        %v1189 = vadd.f32 %v1128, %v1181
        %v1190 = vadd.f32 %v1133, %v1181
        %v1191 = vadd.f32 %v1138, %v1181
        %v1192 = vadd.f32 %v1143, %v1181
        %v1193 = vadd.f32 %v1148, %v1181
        %v1194 = vadd.f32 %v1153, %v1181
        %v1195 = vadd.f32 %v1158, %v1181
        %v1196 = vadd.f32 %v1163, %v1181
        %v1197 = vadd.f32 %v1168, %v1181
        %v1198 = vadd.f32 %v1173, %v1181
        %v1199 = vmax.f32 %v1183, 0.0
        %v1200 = vmax.f32 %v1184, 0.0
        %v1201 = vmax.f32 %v1185, 0.0
        %v1202 = vmax.f32 %v1186, 0.0
        %v1203 = vmax.f32 %v1187, 0.0
        %v1204 = vmax.f32 %v1188, 0.0
        %v1205 = vmax.f32 %v1189, 0.0
        %v1206 = vmax.f32 %v1190, 0.0
        %v1207 = vmax.f32 %v1191, 0.0
        %v1208 = vmax.f32 %v1192, 0.0
        %v1209 = vmax.f32 %v1193, 0.0
        %v1210 = vmax.f32 %v1194, 0.0
        %v1211 = vmax.f32 %v1195, 0.0
        %v1212 = vmax.f32 %v1196, 0.0
        %v1213 = vmax.f32 %v1197, 0.0
        %v1214 = vmax.f32 %v1198, 0.0
        %s1215 = scalar_lea.vmem [#allocation2], %s349
        %vm1216 = vcmask 523264
        %1217 = vst.msk [vmem:[%s1215] sm:$0xff] %vm1216, %v1199
        %1218 = vst.msk [vmem:[%s1215 + $0x8] sm:$0xff] %vm1216, %v1200
        %1219 = vst.msk [vmem:[%s1215 + $0x10] sm:$0xff] %vm1216, %v1201
        %1220 = vst.msk [vmem:[%s1215 + $0x18] sm:$0xff] %vm1216, %v1202
        %1221 = vst.msk [vmem:[%s1215 + $0x20] sm:$0xff] %vm1216, %v1203
        %1222 = vst.msk [vmem:[%s1215 + $0x28] sm:$0xff] %vm1216, %v1204
        %1223 = vst.msk [vmem:[%s1215 + $0x30] sm:$0xff] %vm1216, %v1205
        %1224 = vst.msk [vmem:[%s1215 + $0x38] sm:$0xff] %vm1216, %v1206
        %1225 = vst.msk [vmem:[%s1215 + $0x40] sm:$0xff] %vm1216, %v1207
        %1226 = vst.msk [vmem:[%s1215 + $0x48] sm:$0xff] %vm1216, %v1208
        %1227 = vst.msk [vmem:[%s1215 + $0x50] sm:$0xff] %vm1216, %v1209
        %1228 = vst.msk [vmem:[%s1215 + $0x58] sm:$0xff] %vm1216, %v1210
        %1229 = vst.msk [vmem:[%s1215 + $0x60] sm:$0xff] %vm1216, %v1211
        %1230 = vst.msk [vmem:[%s1215 + $0x68] sm:$0xff] %vm1216, %v1212
        %1231 = vst.msk [vmem:[%s1215 + $0x70] sm:$0xff] %vm1216, %v1213
        %1232 = vst.msk [vmem:[%s1215 + $0x78] sm:$0xff] %vm1216, %v1214
        %v1233 = vmul.f32 %v671, %v1199
        %v1234 = vmul.f32 %v676, %v1200
        %v1235 = vmul.f32 %v681, %v1201
        %v1236 = vmul.f32 %v686, %v1202
        %v1237 = vmul.f32 %v691, %v1203
        %v1238 = vmul.f32 %v696, %v1204
        %v1239 = vmul.f32 %v701, %v1205
        %v1240 = vmul.f32 %v706, %v1206
        %v1241 = vmul.f32 %v711, %v1207
        %v1242 = vmul.f32 %v716, %v1208
        %v1243 = vmul.f32 %v721, %v1209
        %v1244 = vmul.f32 %v726, %v1210
        %v1245 = vmul.f32 %v731, %v1211
        %v1246 = vmul.f32 %v736, %v1212
        %v1247 = vmul.f32 %v741, %v1213
        %v1248 = vmul.f32 %v746, %v1214
        %v1249 = vpack.c.bf16 %v1234, %v1233
        %v1250 = vpack.c.bf16 %v1236, %v1235
        %v1251 = vpack.c.bf16 %v1238, %v1237
        %v1252 = vpack.c.bf16 %v1240, %v1239
        %v1253 = vpack.c.bf16 %v1242, %v1241
        %v1254 = vpack.c.bf16 %v1244, %v1243
        %v1255 = vpack.c.bf16 %v1246, %v1245
        %v1256 = vpack.c.bf16 %v1248, %v1247
        %v1265 = vunpack.c.l.b16 %v1249
        %v1266 = vunpack.c.h.b16 %v1249
        %v1267 = vunpack.c.l.b16 %v1250
        %v1268 = vunpack.c.h.b16 %v1250
        %v1269 = vunpack.c.l.b16 %v1251
        %v1270 = vunpack.c.h.b16 %v1251
        %v1271 = vunpack.c.l.b16 %v1252
        %v1272 = vunpack.c.h.b16 %v1252
        %v1273 = vunpack.c.l.b16 %v1253
        %v1274 = vunpack.c.h.b16 %v1253
        %v1275 = vunpack.c.l.b16 %v1254
        %v1276 = vunpack.c.h.b16 %v1254
        %v1277 = vunpack.c.l.b16 %v1255
        %v1278 = vunpack.c.h.b16 %v1255
        %v1279 = vunpack.c.l.b16 %v1256
        %v1280 = vunpack.c.h.b16 %v1256
        %v1281 = vpack.c.b16 %v1265, %v1265
        %v1282 = vpack.c.b16 %v1266, %v1266
        %v1283 = vpack.c.b16 %v1267, %v1267
        %v1284 = vpack.c.b16 %v1268, %v1268
        %v1285 = vpack.c.b16 %v1269, %v1269
        %v1286 = vpack.c.b16 %v1270, %v1270
        %v1287 = vpack.c.b16 %v1271, %v1271
        %v1288 = vpack.c.b16 %v1272, %v1272
        %v1289 = vpack.c.b16 %v1273, %v1273
        %v1290 = vpack.c.b16 %v1274, %v1274
        %v1291 = vpack.c.b16 %v1275, %v1275
        %v1292 = vpack.c.b16 %v1276, %v1276
        %v1293 = vpack.c.b16 %v1277, %v1277
        %v1294 = vpack.c.b16 %v1278, %v1278
        %v1295 = vpack.c.b16 %v1279, %v1279
        %v1296 = vpack.c.b16 %v1280, %v1280
        %s1313 = sshra.s32 %s349, 3
        %s1314 = sand.u32 %s349, 7
        %s1315 = smul.addr %s1313, 4
        %s1316 = scalar_lea.vmem [#allocation3], %s1315
        %vm1317 = vcmask 519168
        %1318 = vst.msk [vmem:[%s1316] sm:$0xf] %vm1317, %v1281
        %1319 = vst.msk [vmem:[%s1316 + $0x4] sm:$0xf] %vm1317, %v1282
        %1320 = vst.msk [vmem:[%s1316 + $0x8] sm:$0xf] %vm1317, %v1283
        %1321 = vst.msk [vmem:[%s1316 + $0xc] sm:$0xf] %vm1317, %v1284
        %1322 = vst.msk [vmem:[%s1316 + $0x10] sm:$0xf] %vm1317, %v1285
        %1323 = vst.msk [vmem:[%s1316 + $0x14] sm:$0xf] %vm1317, %v1286
        %1324 = vst.msk [vmem:[%s1316 + $0x18] sm:$0xf] %vm1317, %v1287
        %1325 = vst.msk [vmem:[%s1316 + $0x1c] sm:$0xf] %vm1317, %v1288
        %1326 = vst.msk [vmem:[%s1316 + $0x20] sm:$0xf] %vm1317, %v1289
        %1327 = vst.msk [vmem:[%s1316 + $0x24] sm:$0xf] %vm1317, %v1290
        %1328 = vst.msk [vmem:[%s1316 + $0x28] sm:$0xf] %vm1317, %v1291
        %1329 = vst.msk [vmem:[%s1316 + $0x2c] sm:$0xf] %vm1317, %v1292
        %1330 = vst.msk [vmem:[%s1316 + $0x30] sm:$0xf] %vm1317, %v1293
        %1331 = vst.msk [vmem:[%s1316 + $0x34] sm:$0xf] %vm1317, %v1294
        %1332 = vst.msk [vmem:[%s1316 + $0x38] sm:$0xf] %vm1317, %v1295
        %1333 = vst.msk [vmem:[%s1316 + $0x3c] sm:$0xf] %vm1317, %v1296
        %1334 = vst [vmem:[%s346] sm:$0xff] 0.0
        %1335 = vst [vmem:[%s346 + $0x8] sm:$0xff] 0.0
        %1336 = vst [vmem:[%s346 + $0x10] sm:$0xff] 0.0
        %1337 = vst [vmem:[%s346 + $0x18] sm:$0xff] 0.0
        %1338 = vst [vmem:[%s346 + $0x20] sm:$0xff] 0.0
        %1339 = vst [vmem:[%s346 + $0x28] sm:$0xff] 0.0
        %1340 = vst [vmem:[%s346 + $0x30] sm:$0xff] 0.0
        %1341 = vst [vmem:[%s346 + $0x38] sm:$0xff] 0.0
        %1342 = vst [vmem:[%s346 + $0x40] sm:$0xff] 0.0
        %1343 = vst [vmem:[%s346 + $0x48] sm:$0xff] 0.0
        %1344 = vst [vmem:[%s346 + $0x50] sm:$0xff] 0.0
        %1345 = vst [vmem:[%s346 + $0x58] sm:$0xff] 0.0
        %1346 = vst [vmem:[%s346 + $0x60] sm:$0xff] 0.0
        %1347 = vst [vmem:[%s346 + $0x68] sm:$0xff] 0.0
        %1348 = vst [vmem:[%s346 + $0x70] sm:$0xff] 0.0
        %1349 = vst [vmem:[%s346 + $0x78] sm:$0xff] 0.0
      $region60: #{arma2_forward.1} parent=55 // pred_fallthru
        _
      %p1350 = scmp.eq.s32.totalorder %s24, 1
      // Predicated region
      $region61: #{arma2_forward.1} parent=55 // pred_check
        %p1351 = pneg %p1350
      $region62: #{arma2_forward.1} parent=55 // pred_check_branch
        %1353 = sbr.rel (%p1351) target = $region64
      $region63: #{arma2_forward.1} parent=55 // pred_region
        %v1354 = vld [vmem:[#allocation3] sm:$0xf]
        %v1355 = vld [vmem:[#allocation3 + $0x4] sm:$0xf]
        %v1356 = vld [vmem:[#allocation3 + $0x8] sm:$0xf]
        %v1357 = vld [vmem:[#allocation3 + $0xc] sm:$0xf]
        %v1358 = vld [vmem:[#allocation3 + $0x10] sm:$0xf]
        %v1359 = vld [vmem:[#allocation3 + $0x14] sm:$0xf]
        %v1360 = vld [vmem:[#allocation3 + $0x18] sm:$0xf]
        %v1361 = vld [vmem:[#allocation3 + $0x1c] sm:$0xf]
        %v1362 = vld [vmem:[#allocation3 + $0x20] sm:$0xf]
        %v1363 = vld [vmem:[#allocation3 + $0x24] sm:$0xf]
        %v1364 = vld [vmem:[#allocation3 + $0x28] sm:$0xf]
        %v1365 = vld [vmem:[#allocation3 + $0x2c] sm:$0xf]
        %v1366 = vld [vmem:[#allocation3 + $0x30] sm:$0xf]
        %v1367 = vld [vmem:[#allocation3 + $0x34] sm:$0xf]
        %v1368 = vld [vmem:[#allocation3 + $0x38] sm:$0xf]
        %v1369 = vld [vmem:[#allocation3 + $0x3c] sm:$0xf]
        %v1386 = vunpack.c.l.b16 %v350
        %v1387 = vunpack.c.l.b16 %v351
        %v1388 = vunpack.c.l.b16 %v352
        %v1389 = vunpack.c.l.b16 %v353
        %v1390 = vunpack.c.l.b16 %v354
        %v1391 = vunpack.c.l.b16 %v355
        %v1392 = vunpack.c.l.b16 %v356
        %v1393 = vunpack.c.l.b16 %v357
        %v1394 = vunpack.c.l.b16 %v358
        %v1395 = vunpack.c.l.b16 %v359
        %v1396 = vunpack.c.l.b16 %v360
        %v1397 = vunpack.c.l.b16 %v361
        %v1398 = vunpack.c.l.b16 %v362
        %v1399 = vunpack.c.l.b16 %v363
        %v1400 = vunpack.c.l.b16 %v364
        %v1401 = vunpack.c.l.b16 %v365
        %v1402 = vpack.c.b16 %v1387, %v1386
        %v1403 = vpack.c.b16 %v1389, %v1388
        %v1404 = vpack.c.b16 %v1391, %v1390
        %v1405 = vpack.c.b16 %v1393, %v1392
        %v1406 = vpack.c.b16 %v1395, %v1394
        %v1407 = vpack.c.b16 %v1397, %v1396
        %v1408 = vpack.c.b16 %v1399, %v1398
        %v1409 = vpack.c.b16 %v1401, %v1400
        %v1434 = vunpack.c.l.b16 %v1354
        %v1435 = vunpack.c.l.b16 %v1355
        %v1436 = vunpack.c.l.b16 %v1356
        %v1437 = vunpack.c.l.b16 %v1357
        %v1438 = vunpack.c.l.b16 %v1358
        %v1439 = vunpack.c.l.b16 %v1359
        %v1440 = vunpack.c.l.b16 %v1360
        %v1441 = vunpack.c.l.b16 %v1361
        %v1442 = vunpack.c.l.b16 %v1362
        %v1443 = vunpack.c.l.b16 %v1363
        %v1444 = vunpack.c.l.b16 %v1364
        %v1445 = vunpack.c.l.b16 %v1365
        %v1446 = vunpack.c.l.b16 %v1366
        %v1447 = vunpack.c.l.b16 %v1367
        %v1448 = vunpack.c.l.b16 %v1368
        %v1449 = vunpack.c.l.b16 %v1369
        %v1450 = vpack.c.b16 %v1435, %v1434
        %v1451 = vpack.c.b16 %v1437, %v1436
        %v1452 = vpack.c.b16 %v1439, %v1438
        %v1453 = vpack.c.b16 %v1441, %v1440
        %v1454 = vpack.c.b16 %v1443, %v1442
        %v1455 = vpack.c.b16 %v1445, %v1444
        %v1456 = vpack.c.b16 %v1447, %v1446
        %v1457 = vpack.c.b16 %v1449, %v1448
        %1466 = vmatprep.subr.bf16.mxu0 0
        %1467 = vmatpush1.bf16.msra.mxu0 %v1457
        %1468 = vmatprep.subr.bf16.mxu0 0
        %1469 = vmatpush1.bf16.msra.mxu0 %v1456
        %1470 = vmatprep.subr.bf16.mxu0 0
        %1471 = vmatpush1.bf16.msra.mxu0 %v1455
        %1472 = vmatprep.subr.bf16.mxu0 0
        %1473 = vmatpush1.bf16.msra.mxu0 %v1454
        %1474 = vmatprep.subr.bf16.mxu0 0
        %1475 = vmatpush1.bf16.msra.mxu0 %v1453
        %1476 = vmatprep.subr.bf16.mxu0 0
        %1477 = vmatpush1.bf16.msra.mxu0 %v1452
        %1478 = vmatprep.subr.bf16.mxu0 0
        %1479 = vmatpush1.bf16.msra.mxu0 %v1451
        %1480 = vmatprep.subr.bf16.mxu0 0
        %1481 = vmatpush1.bf16.msra.mxu0 %v1450
        %1482 = vmatprep.subr.bf16.mxu0 0
        %1483 = vmatpush2.bf16.msra.mxu0 0
        %1484 = vmatprep.subr.bf16.mxu0 0
        %1485 = vmatpush2.bf16.msra.mxu0 0
        %1486 = vmatprep.subr.bf16.mxu0 0
        %1487 = vmatpush2.bf16.msra.mxu0 0
        %1488 = vmatprep.subr.bf16.mxu0 0
        %1489 = vmatpush2.bf16.msra.mxu0 0
        %1490 = vmatprep.subr.bf16.mxu0 0
        %1491 = vmatpush2.bf16.msra.mxu0 0
        %1492 = vmatprep.subr.bf16.mxu0 0
        %1493 = vmatpush2.bf16.msra.mxu0 0
        %1494 = vmatprep.subr.bf16.mxu0 0
        %1495 = vmatpush2.bf16.msra.mxu0 0
        %1496 = vmatprep.subr.bf16.mxu0 0
        %1497 = vmatpush2.bf16.msra.mxu0 0
        %1498 = vmatprep.mubr.bf16.mxu0 0
        %1499 = vmatmul.mubr.bf16.gmra.mxu0 %v1402
        %v1500 = vpop.f32.mrf.mxu0
        %v1501 = vadd.f32 0.0, %v1500
        %v1502 = vpop.f32.mrf.mxu0
        %v1503 = vpop.f32.mrf.mxu0
        %v1504 = vadd.f32 0.0, %v1503
        %v1505 = vpop.f32.mrf.mxu0
        %1506 = vmatprep.mubr.bf16.mxu0 0
        %1507 = vmatmul.mubr.bf16.gmra.mxu0 %v1403
        %v1508 = vpop.f32.mrf.mxu0
        %v1509 = vadd.f32 0.0, %v1508
        %v1510 = vpop.f32.mrf.mxu0
        %v1511 = vpop.f32.mrf.mxu0
        %v1512 = vadd.f32 0.0, %v1511
        %v1513 = vpop.f32.mrf.mxu0
        %1514 = vmatprep.mubr.bf16.mxu0 0
        %1515 = vmatmul.mubr.bf16.gmra.mxu0 %v1404
        %v1516 = vpop.f32.mrf.mxu0
        %v1517 = vadd.f32 0.0, %v1516
        %v1518 = vpop.f32.mrf.mxu0
        %v1519 = vpop.f32.mrf.mxu0
        %v1520 = vadd.f32 0.0, %v1519
        %v1521 = vpop.f32.mrf.mxu0
        %1522 = vmatprep.mubr.bf16.mxu0 0
        %1523 = vmatmul.mubr.bf16.gmra.mxu0 %v1405
        %v1524 = vpop.f32.mrf.mxu0
        %v1525 = vadd.f32 0.0, %v1524
        %v1526 = vpop.f32.mrf.mxu0
        %v1527 = vpop.f32.mrf.mxu0
        %v1528 = vadd.f32 0.0, %v1527
        %v1529 = vpop.f32.mrf.mxu0
        %1530 = vmatprep.mubr.bf16.mxu0 0
        %1531 = vmatmul.mubr.bf16.gmra.mxu0 %v1406
        %v1532 = vpop.f32.mrf.mxu0
        %v1533 = vadd.f32 0.0, %v1532
        %v1534 = vpop.f32.mrf.mxu0
        %v1535 = vpop.f32.mrf.mxu0
        %v1536 = vadd.f32 0.0, %v1535
        %v1537 = vpop.f32.mrf.mxu0
        %1538 = vmatprep.mubr.bf16.mxu0 0
        %1539 = vmatmul.mubr.bf16.gmra.mxu0 %v1407
        %v1540 = vpop.f32.mrf.mxu0
        %v1541 = vadd.f32 0.0, %v1540
        %v1542 = vpop.f32.mrf.mxu0
        %v1543 = vpop.f32.mrf.mxu0
        %v1544 = vadd.f32 0.0, %v1543
        %v1545 = vpop.f32.mrf.mxu0
        %1546 = vmatprep.mubr.bf16.mxu0 0
        %1547 = vmatmul.mubr.bf16.gmra.mxu0 %v1408
        %v1548 = vpop.f32.mrf.mxu0
        %v1549 = vadd.f32 0.0, %v1548
        %v1550 = vpop.f32.mrf.mxu0
        %v1551 = vpop.f32.mrf.mxu0
        %v1552 = vadd.f32 0.0, %v1551
        %v1553 = vpop.f32.mrf.mxu0
        %1554 = vmatprep.mubr.bf16.mxu0 0
        %1555 = vmatmul.mubr.bf16.gmra.mxu0 %v1409
        %v1556 = vpop.f32.mrf.mxu0
        %v1557 = vadd.f32 0.0, %v1556
        %v1558 = vpop.f32.mrf.mxu0
        %v1559 = vpop.f32.mrf.mxu0
        %v1560 = vadd.f32 0.0, %v1559
        %v1561 = vpop.f32.mrf.mxu0
        %1562 = vdwg.mxu0
        %1564 = vset.pattern.permute.xlu0 0
        %1565 = vperm.xlu0 %1564, %v367
        %v1566 = vpop.permute.xlu0 %1565
        %1569 = vset.pattern.permute.xlu0 0
        %1570 = vperm.xlu0 %1569, %v368
        %v1571 = vpop.permute.xlu0 %1570
        %1574 = vset.pattern.permute.xlu0 0
        %1575 = vperm.xlu0 %1574, %v369
        %v1576 = vpop.permute.xlu0 %1575
        %1579 = vset.pattern.permute.xlu0 0
        %1580 = vperm.xlu0 %1579, %v370
        %v1581 = vpop.permute.xlu0 %1580
        %1584 = vset.pattern.permute.xlu0 0
        %1585 = vperm.xlu0 %1584, %v371
        %v1586 = vpop.permute.xlu0 %1585
        %1589 = vset.pattern.permute.xlu0 0
        %1590 = vperm.xlu0 %1589, %v372
        %v1591 = vpop.permute.xlu0 %1590
        %1594 = vset.pattern.permute.xlu0 0
        %1595 = vperm.xlu0 %1594, %v373
        %v1596 = vpop.permute.xlu0 %1595
        %1599 = vset.pattern.permute.xlu0 0
        %1600 = vperm.xlu0 %1599, %v374
        %v1601 = vpop.permute.xlu0 %1600
        %1604 = vset.pattern.permute.xlu0 0
        %1605 = vperm.xlu0 %1604, %v375
        %v1606 = vpop.permute.xlu0 %1605
        %1609 = vset.pattern.permute.xlu0 0
        %1610 = vperm.xlu0 %1609, %v376
        %v1611 = vpop.permute.xlu0 %1610
        %1614 = vset.pattern.permute.xlu0 0
        %1615 = vperm.xlu0 %1614, %v377
        %v1616 = vpop.permute.xlu0 %1615
        %1619 = vset.pattern.permute.xlu0 0
        %1620 = vperm.xlu0 %1619, %v378
        %v1621 = vpop.permute.xlu0 %1620
        %1624 = vset.pattern.permute.xlu0 0
        %1625 = vperm.xlu0 %1624, %v379
        %v1626 = vpop.permute.xlu0 %1625
        %1629 = vset.pattern.permute.xlu0 0
        %1630 = vperm.xlu0 %1629, %v380
        %v1631 = vpop.permute.xlu0 %1630
        %1634 = vset.pattern.permute.xlu0 0
        %1635 = vperm.xlu0 %1634, %v381
        %v1636 = vpop.permute.xlu0 %1635
        %1639 = vset.pattern.permute.xlu0 0
        %1640 = vperm.xlu0 %1639, %v382
        %v1641 = vpop.permute.xlu0 %1640
        %v1643 = vmul.f32 %v1566, %v1501
        %v1644 = vmul.f32 %v1571, %v1504
        %v1645 = vmul.f32 %v1576, %v1509
        %v1646 = vmul.f32 %v1581, %v1512
        %v1647 = vmul.f32 %v1586, %v1517
        %v1648 = vmul.f32 %v1591, %v1520
        %v1649 = vmul.f32 %v1596, %v1525
        %v1650 = vmul.f32 %v1601, %v1528
        %v1651 = vmul.f32 %v1606, %v1533
        %v1652 = vmul.f32 %v1611, %v1536
        %v1653 = vmul.f32 %v1616, %v1541
        %v1654 = vmul.f32 %v1621, %v1544
        %v1655 = vmul.f32 %v1626, %v1549
        %v1656 = vmul.f32 %v1631, %v1552
        %v1657 = vmul.f32 %v1636, %v1557
        %v1658 = vmul.f32 %v1641, %v1560
        %s1659 = scalar_lea.vmem [#allocation2], %s349
        %v1660 = vld [vmem:[%s1659] sm:$0xff]
        %v1661 = vld [vmem:[%s1659 + $0x8] sm:$0xff]
        %v1662 = vld [vmem:[%s1659 + $0x10] sm:$0xff]
        %v1663 = vld [vmem:[%s1659 + $0x18] sm:$0xff]
        %v1664 = vld [vmem:[%s1659 + $0x20] sm:$0xff]
        %v1665 = vld [vmem:[%s1659 + $0x28] sm:$0xff]
        %v1666 = vld [vmem:[%s1659 + $0x30] sm:$0xff]
        %v1667 = vld [vmem:[%s1659 + $0x38] sm:$0xff]
        %v1668 = vld [vmem:[%s1659 + $0x40] sm:$0xff]
        %v1669 = vld [vmem:[%s1659 + $0x48] sm:$0xff]
        %v1670 = vld [vmem:[%s1659 + $0x50] sm:$0xff]
        %v1671 = vld [vmem:[%s1659 + $0x58] sm:$0xff]
        %v1672 = vld [vmem:[%s1659 + $0x60] sm:$0xff]
        %v1673 = vld [vmem:[%s1659 + $0x68] sm:$0xff]
        %v1674 = vld [vmem:[%s1659 + $0x70] sm:$0xff]
        %v1675 = vld [vmem:[%s1659 + $0x78] sm:$0xff]
        %v1676 = vld [vmem:[%s6] sm:$0xff]
        %v1677 = vld [vmem:[%s6 + $0x8] sm:$0xff]
        %v1678 = vld [vmem:[%s6 + $0x10] sm:$0xff]
        %v1679 = vld [vmem:[%s6 + $0x18] sm:$0xff]
        %v1680 = vld [vmem:[%s6 + $0x20] sm:$0xff]
        %v1681 = vld [vmem:[%s6 + $0x28] sm:$0xff]
        %v1682 = vld [vmem:[%s6 + $0x30] sm:$0xff]
        %v1683 = vld [vmem:[%s6 + $0x38] sm:$0xff]
        %v1684 = vld [vmem:[%s7] sm:$0xff]
        %v1685 = vld [vmem:[%s7 + $0x8] sm:$0xff]
        %v1686 = vld [vmem:[%s7 + $0x10] sm:$0xff]
        %v1687 = vld [vmem:[%s7 + $0x18] sm:$0xff]
        %v1688 = vld [vmem:[%s7 + $0x20] sm:$0xff]
        %v1689 = vld [vmem:[%s7 + $0x28] sm:$0xff]
        %v1690 = vld [vmem:[%s7 + $0x30] sm:$0xff]
        %v1691 = vld [vmem:[%s7 + $0x38] sm:$0xff]
        %vm1692 = vcmask 523264
        %v1694 = vsel %vm1692, %v1660, 0
        %v1697 = vsel %vm1692, %v1661, 0
        %v1700 = vsel %vm1692, %v1662, 0
        %v1703 = vsel %vm1692, %v1663, 0
        %v1706 = vsel %vm1692, %v1664, 0
        %v1709 = vsel %vm1692, %v1665, 0
        %v1712 = vsel %vm1692, %v1666, 0
        %v1715 = vsel %vm1692, %v1667, 0
        %v1718 = vsel %vm1692, %v1668, 0
        %v1721 = vsel %vm1692, %v1669, 0
        %v1724 = vsel %vm1692, %v1670, 0
        %v1727 = vsel %vm1692, %v1671, 0
        %v1730 = vsel %vm1692, %v1672, 0
        %v1733 = vsel %vm1692, %v1673, 0
        %v1736 = vsel %vm1692, %v1674, 0
        %v1739 = vsel %vm1692, %v1675, 0
        %1741 = vmatprep.subr.mxu0 0.0
        %1742 = vmatpush1.msra.mxu0 0.0
        %1743 = vmatprep.subr.mxu0 0.0
        %1744 = vmatpush1.msra.mxu0 0.0
        %1745 = vmatprep.subr.mxu0 0.0
        %1746 = vmatpush1.msra.mxu0 0.0
        %1747 = vmatprep.subr.mxu0 0.0
        %1748 = vmatpush1.msra.mxu0 0.0
        %1749 = vmatprep.subr.mxu0 0.0
        %1750 = vmatpush1.msra.mxu0 0.0
        %1751 = vmatprep.subr.mxu0 0.0
        %1752 = vmatpush1.msra.mxu0 0.0
        %1753 = vmatprep.subr.mxu0 0.0
        %1754 = vmatpush1.msra.mxu0 0.0
        %1755 = vmatprep.subr.mxu0 0.0
        %1756 = vmatpush1.msra.mxu0 0.0
        %1757 = vmatprep.subr.mxu0 0.0
        %1758 = vmatpush1.msra.mxu0 %v1691
        %1759 = vmatprep.subr.mxu0 0.0
        %1760 = vmatpush1.msra.mxu0 %v1690
        %1761 = vmatprep.subr.mxu0 0.0
        %1762 = vmatpush1.msra.mxu0 %v1689
        %1763 = vmatprep.subr.mxu0 0.0
        %1764 = vmatpush1.msra.mxu0 %v1688
        %1765 = vmatprep.subr.mxu0 0.0
        %1766 = vmatpush1.msra.mxu0 %v1687
        %1767 = vmatprep.subr.mxu0 0.0
        %1768 = vmatpush1.msra.mxu0 %v1686
        %1769 = vmatprep.subr.mxu0 0.0
        %1770 = vmatpush1.msra.mxu0 %v1685
        %1771 = vmatprep.subr.mxu0 0.0
        %1772 = vmatpush1.msra.mxu0 %v1684
        %1773 = vmatprep.subr.mxu0 0.0
        %1774 = vmatpush2.msra.mxu0 0.0
        %1775 = vmatprep.subr.mxu0 0.0
        %1776 = vmatpush2.msra.mxu0 0.0
        %1777 = vmatprep.subr.mxu0 0.0
        %1778 = vmatpush2.msra.mxu0 0.0
        %1779 = vmatprep.subr.mxu0 0.0
        %1780 = vmatpush2.msra.mxu0 0.0
        %1781 = vmatprep.subr.mxu0 0.0
        %1782 = vmatpush2.msra.mxu0 0.0
        %1783 = vmatprep.subr.mxu0 0.0
        %1784 = vmatpush2.msra.mxu0 0.0
        %1785 = vmatprep.subr.mxu0 0.0
        %1786 = vmatpush2.msra.mxu0 0.0
        %1787 = vmatprep.subr.mxu0 0.0
        %1788 = vmatpush2.msra.mxu0 0.0
        %1789 = vmatprep.subr.mxu0 0.0
        %1790 = vmatpush2.msra.mxu0 0.0
        %1791 = vmatprep.subr.mxu0 0.0
        %1792 = vmatpush2.msra.mxu0 0.0
        %1793 = vmatprep.subr.mxu0 0.0
        %1794 = vmatpush2.msra.mxu0 0.0
        %1795 = vmatprep.subr.mxu0 0.0
        %1796 = vmatpush2.msra.mxu0 0.0
        %1797 = vmatprep.subr.mxu0 0.0
        %1798 = vmatpush2.msra.mxu0 0.0
        %1799 = vmatprep.subr.mxu0 0.0
        %1800 = vmatpush2.msra.mxu0 0.0
        %1801 = vmatprep.subr.mxu0 0.0
        %1802 = vmatpush2.msra.mxu0 0.0
        %1803 = vmatprep.subr.mxu0 0.0
        %1804 = vmatpush2.msra.mxu0 0.0
        %1805 = vmatprep.mubr.f32.mxu0 0.0
        %1806 = vmatmul.mubr.f32.gmra.mxu0 %v1694
        %v1807 = vpop.f32.mrf.mxu0
        %v1808 = vadd.f32 0.0, %v1807
        %v1809 = vpop.f32.mrf.mxu0
        %1810 = vmatprep.mubr.f32.mxu0 0.0
        %1811 = vmatmul.mubr.f32.gmra.mxu0 %v1697
        %v1812 = vpop.f32.mrf.mxu0
        %v1813 = vadd.f32 0.0, %v1812
        %v1814 = vpop.f32.mrf.mxu0
        %1815 = vmatprep.mubr.f32.mxu0 0.0
        %1816 = vmatmul.mubr.f32.gmra.mxu0 %v1700
        %v1817 = vpop.f32.mrf.mxu0
        %v1818 = vadd.f32 0.0, %v1817
        %v1819 = vpop.f32.mrf.mxu0
        %1820 = vmatprep.mubr.f32.mxu0 0.0
        %1821 = vmatmul.mubr.f32.gmra.mxu0 %v1703
        %v1822 = vpop.f32.mrf.mxu0
        %v1823 = vadd.f32 0.0, %v1822
        %v1824 = vpop.f32.mrf.mxu0
        %1825 = vmatprep.mubr.f32.mxu0 0.0
        %1826 = vmatmul.mubr.f32.gmra.mxu0 %v1706
        %v1827 = vpop.f32.mrf.mxu0
        %v1828 = vadd.f32 0.0, %v1827
        %v1829 = vpop.f32.mrf.mxu0
        %1830 = vmatprep.mubr.f32.mxu0 0.0
        %1831 = vmatmul.mubr.f32.gmra.mxu0 %v1709
        %v1832 = vpop.f32.mrf.mxu0
        %v1833 = vadd.f32 0.0, %v1832
        %v1834 = vpop.f32.mrf.mxu0
        %1835 = vmatprep.mubr.f32.mxu0 0.0
        %1836 = vmatmul.mubr.f32.gmra.mxu0 %v1712
        %v1837 = vpop.f32.mrf.mxu0
        %v1838 = vadd.f32 0.0, %v1837
        %v1839 = vpop.f32.mrf.mxu0
        %1840 = vmatprep.mubr.f32.mxu0 0.0
        %1841 = vmatmul.mubr.f32.gmra.mxu0 %v1715
        %v1842 = vpop.f32.mrf.mxu0
        %v1843 = vadd.f32 0.0, %v1842
        %v1844 = vpop.f32.mrf.mxu0
        %1845 = vmatprep.mubr.f32.mxu0 0.0
        %1846 = vmatmul.mubr.f32.gmra.mxu0 %v1718
        %v1847 = vpop.f32.mrf.mxu0
        %v1848 = vadd.f32 0.0, %v1847
        %v1849 = vpop.f32.mrf.mxu0
        %1850 = vmatprep.mubr.f32.mxu0 0.0
        %1851 = vmatmul.mubr.f32.gmra.mxu0 %v1721
        %v1852 = vpop.f32.mrf.mxu0
        %v1853 = vadd.f32 0.0, %v1852
        %v1854 = vpop.f32.mrf.mxu0
        %1855 = vmatprep.mubr.f32.mxu0 0.0
        %1856 = vmatmul.mubr.f32.gmra.mxu0 %v1724
        %v1857 = vpop.f32.mrf.mxu0
        %v1858 = vadd.f32 0.0, %v1857
        %v1859 = vpop.f32.mrf.mxu0
        %1860 = vmatprep.mubr.f32.mxu0 0.0
        %1861 = vmatmul.mubr.f32.gmra.mxu0 %v1727
        %v1862 = vpop.f32.mrf.mxu0
        %v1863 = vadd.f32 0.0, %v1862
        %v1864 = vpop.f32.mrf.mxu0
        %1865 = vmatprep.mubr.f32.mxu0 0.0
        %1866 = vmatmul.mubr.f32.gmra.mxu0 %v1730
        %v1867 = vpop.f32.mrf.mxu0
        %v1868 = vadd.f32 0.0, %v1867
        %v1869 = vpop.f32.mrf.mxu0
        %1870 = vmatprep.mubr.f32.mxu0 0.0
        %1871 = vmatmul.mubr.f32.gmra.mxu0 %v1733
        %v1872 = vpop.f32.mrf.mxu0
        %v1873 = vadd.f32 0.0, %v1872
        %v1874 = vpop.f32.mrf.mxu0
        %1875 = vmatprep.mubr.f32.mxu0 0.0
        %1876 = vmatmul.mubr.f32.gmra.mxu0 %v1736
        %v1877 = vpop.f32.mrf.mxu0
        %v1878 = vadd.f32 0.0, %v1877
        %v1879 = vpop.f32.mrf.mxu0
        %1880 = vmatprep.mubr.f32.mxu0 0.0
        %1881 = vmatmul.mubr.f32.gmra.mxu0 %v1739
        %v1882 = vpop.f32.mrf.mxu0
        %v1883 = vadd.f32 0.0, %v1882
        %v1884 = vpop.f32.mrf.mxu0
        %1885 = vdwg.mxu0
        %v1887 = vsel %vm1692, %v1643, 0
        %v1890 = vsel %vm1692, %v1644, 0
        %v1893 = vsel %vm1692, %v1645, 0
        %v1896 = vsel %vm1692, %v1646, 0
        %v1899 = vsel %vm1692, %v1647, 0
        %v1902 = vsel %vm1692, %v1648, 0
        %v1905 = vsel %vm1692, %v1649, 0
        %v1908 = vsel %vm1692, %v1650, 0
        %v1911 = vsel %vm1692, %v1651, 0
        %v1914 = vsel %vm1692, %v1652, 0
        %v1917 = vsel %vm1692, %v1653, 0
        %v1920 = vsel %vm1692, %v1654, 0
        %v1923 = vsel %vm1692, %v1655, 0
        %v1926 = vsel %vm1692, %v1656, 0
        %v1929 = vsel %vm1692, %v1657, 0
        %v1932 = vsel %vm1692, %v1658, 0
        %1934 = vmatprep.subr.mxu0 0.0
        %1935 = vmatpush1.msra.mxu0 0.0
        %1936 = vmatprep.subr.mxu0 0.0
        %1937 = vmatpush1.msra.mxu0 0.0
        %1938 = vmatprep.subr.mxu0 0.0
        %1939 = vmatpush1.msra.mxu0 0.0
        %1940 = vmatprep.subr.mxu0 0.0
        %1941 = vmatpush1.msra.mxu0 0.0
        %1942 = vmatprep.subr.mxu0 0.0
        %1943 = vmatpush1.msra.mxu0 0.0
        %1944 = vmatprep.subr.mxu0 0.0
        %1945 = vmatpush1.msra.mxu0 0.0
        %1946 = vmatprep.subr.mxu0 0.0
        %1947 = vmatpush1.msra.mxu0 0.0
        %1948 = vmatprep.subr.mxu0 0.0
        %1949 = vmatpush1.msra.mxu0 0.0
        %1950 = vmatprep.subr.mxu0 0.0
        %1951 = vmatpush1.msra.mxu0 %v1683
        %1952 = vmatprep.subr.mxu0 0.0
        %1953 = vmatpush1.msra.mxu0 %v1682
        %1954 = vmatprep.subr.mxu0 0.0
        %1955 = vmatpush1.msra.mxu0 %v1681
        %1956 = vmatprep.subr.mxu0 0.0
        %1957 = vmatpush1.msra.mxu0 %v1680
        %1958 = vmatprep.subr.mxu0 0.0
        %1959 = vmatpush1.msra.mxu0 %v1679
        %1960 = vmatprep.subr.mxu0 0.0
        %1961 = vmatpush1.msra.mxu0 %v1678
        %1962 = vmatprep.subr.mxu0 0.0
        %1963 = vmatpush1.msra.mxu0 %v1677
        %1964 = vmatprep.subr.mxu0 0.0
        %1965 = vmatpush1.msra.mxu0 %v1676
        %1966 = vmatprep.subr.mxu0 0.0
        %1967 = vmatpush2.msra.mxu0 0.0
        %1968 = vmatprep.subr.mxu0 0.0
        %1969 = vmatpush2.msra.mxu0 0.0
        %1970 = vmatprep.subr.mxu0 0.0
        %1971 = vmatpush2.msra.mxu0 0.0
        %1972 = vmatprep.subr.mxu0 0.0
        %1973 = vmatpush2.msra.mxu0 0.0
        %1974 = vmatprep.subr.mxu0 0.0
        %1975 = vmatpush2.msra.mxu0 0.0
        %1976 = vmatprep.subr.mxu0 0.0
        %1977 = vmatpush2.msra.mxu0 0.0
        %1978 = vmatprep.subr.mxu0 0.0
        %1979 = vmatpush2.msra.mxu0 0.0
        %1980 = vmatprep.subr.mxu0 0.0
        %1981 = vmatpush2.msra.mxu0 0.0
        %1982 = vmatprep.subr.mxu0 0.0
        %1983 = vmatpush2.msra.mxu0 0.0
        %1984 = vmatprep.subr.mxu0 0.0
        %1985 = vmatpush2.msra.mxu0 0.0
        %1986 = vmatprep.subr.mxu0 0.0
        %1987 = vmatpush2.msra.mxu0 0.0
        %1988 = vmatprep.subr.mxu0 0.0
        %1989 = vmatpush2.msra.mxu0 0.0
        %1990 = vmatprep.subr.mxu0 0.0
        %1991 = vmatpush2.msra.mxu0 0.0
        %1992 = vmatprep.subr.mxu0 0.0
        %1993 = vmatpush2.msra.mxu0 0.0
        %1994 = vmatprep.subr.mxu0 0.0
        %1995 = vmatpush2.msra.mxu0 0.0
        %1996 = vmatprep.subr.mxu0 0.0
        %1997 = vmatpush2.msra.mxu0 0.0
        %1998 = vmatprep.mubr.f32.mxu0 0.0
        %1999 = vmatmul.mubr.f32.gmra.mxu0 %v1887
        %v2000 = vpop.f32.mrf.mxu0
        %v2001 = vadd.f32 %v1808, %v2000
        %v2002 = vpop.f32.mrf.mxu0
        %2003 = vmatprep.mubr.f32.mxu0 0.0
        %2004 = vmatmul.mubr.f32.gmra.mxu0 %v1890
        %v2005 = vpop.f32.mrf.mxu0
        %v2006 = vadd.f32 %v1813, %v2005
        %v2007 = vpop.f32.mrf.mxu0
        %2008 = vmatprep.mubr.f32.mxu0 0.0
        %2009 = vmatmul.mubr.f32.gmra.mxu0 %v1893
        %v2010 = vpop.f32.mrf.mxu0
        %v2011 = vadd.f32 %v1818, %v2010
        %v2012 = vpop.f32.mrf.mxu0
        %2013 = vmatprep.mubr.f32.mxu0 0.0
        %2014 = vmatmul.mubr.f32.gmra.mxu0 %v1896
        %v2015 = vpop.f32.mrf.mxu0
        %v2016 = vadd.f32 %v1823, %v2015
        %v2017 = vpop.f32.mrf.mxu0
        %2018 = vmatprep.mubr.f32.mxu0 0.0
        %2019 = vmatmul.mubr.f32.gmra.mxu0 %v1899
        %v2020 = vpop.f32.mrf.mxu0
        %v2021 = vadd.f32 %v1828, %v2020
        %v2022 = vpop.f32.mrf.mxu0
        %2023 = vmatprep.mubr.f32.mxu0 0.0
        %2024 = vmatmul.mubr.f32.gmra.mxu0 %v1902
        %v2025 = vpop.f32.mrf.mxu0
        %v2026 = vadd.f32 %v1833, %v2025
        %v2027 = vpop.f32.mrf.mxu0
        %2028 = vmatprep.mubr.f32.mxu0 0.0
        %2029 = vmatmul.mubr.f32.gmra.mxu0 %v1905
        %v2030 = vpop.f32.mrf.mxu0
        %v2031 = vadd.f32 %v1838, %v2030
        %v2032 = vpop.f32.mrf.mxu0
        %2033 = vmatprep.mubr.f32.mxu0 0.0
        %2034 = vmatmul.mubr.f32.gmra.mxu0 %v1908
        %v2035 = vpop.f32.mrf.mxu0
        %v2036 = vadd.f32 %v1843, %v2035
        %v2037 = vpop.f32.mrf.mxu0
        %2038 = vmatprep.mubr.f32.mxu0 0.0
        %2039 = vmatmul.mubr.f32.gmra.mxu0 %v1911
        %v2040 = vpop.f32.mrf.mxu0
        %v2041 = vadd.f32 %v1848, %v2040
        %v2042 = vpop.f32.mrf.mxu0
        %2043 = vmatprep.mubr.f32.mxu0 0.0
        %2044 = vmatmul.mubr.f32.gmra.mxu0 %v1914
        %v2045 = vpop.f32.mrf.mxu0
        %v2046 = vadd.f32 %v1853, %v2045
        %v2047 = vpop.f32.mrf.mxu0
        %2048 = vmatprep.mubr.f32.mxu0 0.0
        %2049 = vmatmul.mubr.f32.gmra.mxu0 %v1917
        %v2050 = vpop.f32.mrf.mxu0
        %v2051 = vadd.f32 %v1858, %v2050
        %v2052 = vpop.f32.mrf.mxu0
        %2053 = vmatprep.mubr.f32.mxu0 0.0
        %2054 = vmatmul.mubr.f32.gmra.mxu0 %v1920
        %v2055 = vpop.f32.mrf.mxu0
        %v2056 = vadd.f32 %v1863, %v2055
        %v2057 = vpop.f32.mrf.mxu0
        %2058 = vmatprep.mubr.f32.mxu0 0.0
        %2059 = vmatmul.mubr.f32.gmra.mxu0 %v1923
        %v2060 = vpop.f32.mrf.mxu0
        %v2061 = vadd.f32 %v1868, %v2060
        %v2062 = vpop.f32.mrf.mxu0
        %2063 = vmatprep.mubr.f32.mxu0 0.0
        %2064 = vmatmul.mubr.f32.gmra.mxu0 %v1926
        %v2065 = vpop.f32.mrf.mxu0
        %v2066 = vadd.f32 %v1873, %v2065
        %v2067 = vpop.f32.mrf.mxu0
        %2068 = vmatprep.mubr.f32.mxu0 0.0
        %2069 = vmatmul.mubr.f32.gmra.mxu0 %v1929
        %v2070 = vpop.f32.mrf.mxu0
        %v2071 = vadd.f32 %v1878, %v2070
        %v2072 = vpop.f32.mrf.mxu0
        %2073 = vmatprep.mubr.f32.mxu0 0.0
        %2074 = vmatmul.mubr.f32.gmra.mxu0 %v1932
        %v2075 = vpop.f32.mrf.mxu0
        %v2076 = vadd.f32 %v1883, %v2075
        %v2077 = vpop.f32.mrf.mxu0
        %2078 = vdwg.mxu0
        %v2079 = vld [vmem:[%s8] sm:$0x1]
        %v2081 = vlaneseq
        %v2082 = vshrl.u32 %v2081, 7
        %v2083 = vsub.s32 0, %v2082
        %v2084 = vrot.slane %v2079, %v2083
        %v2086 = vadd.f32 %v2001, %v2084
        %v2087 = vadd.f32 %v2006, %v2084
        %v2088 = vadd.f32 %v2011, %v2084
        %v2089 = vadd.f32 %v2016, %v2084
        %v2090 = vadd.f32 %v2021, %v2084
        %v2091 = vadd.f32 %v2026, %v2084
        %v2092 = vadd.f32 %v2031, %v2084
        %v2093 = vadd.f32 %v2036, %v2084
        %v2094 = vadd.f32 %v2041, %v2084
        %v2095 = vadd.f32 %v2046, %v2084
        %v2096 = vadd.f32 %v2051, %v2084
        %v2097 = vadd.f32 %v2056, %v2084
        %v2098 = vadd.f32 %v2061, %v2084
        %v2099 = vadd.f32 %v2066, %v2084
        %v2100 = vadd.f32 %v2071, %v2084
        %v2101 = vadd.f32 %v2076, %v2084
        %2102 = vst [vmem:[%s346] sm:$0xff] %v2086
        %2103 = vst [vmem:[%s346 + $0x8] sm:$0xff] %v2087
        %2104 = vst [vmem:[%s346 + $0x10] sm:$0xff] %v2088
        %2105 = vst [vmem:[%s346 + $0x18] sm:$0xff] %v2089
        %2106 = vst [vmem:[%s346 + $0x20] sm:$0xff] %v2090
        %2107 = vst [vmem:[%s346 + $0x28] sm:$0xff] %v2091
        %2108 = vst [vmem:[%s346 + $0x30] sm:$0xff] %v2092
        %2109 = vst [vmem:[%s346 + $0x38] sm:$0xff] %v2093
        %2110 = vst [vmem:[%s346 + $0x40] sm:$0xff] %v2094
        %2111 = vst [vmem:[%s346 + $0x48] sm:$0xff] %v2095
        %2112 = vst [vmem:[%s346 + $0x50] sm:$0xff] %v2096
        %2113 = vst [vmem:[%s346 + $0x58] sm:$0xff] %v2097
        %2114 = vst [vmem:[%s346 + $0x60] sm:$0xff] %v2098
        %2115 = vst [vmem:[%s346 + $0x68] sm:$0xff] %v2099
        %2116 = vst [vmem:[%s346 + $0x70] sm:$0xff] %v2100
        %2117 = vst [vmem:[%s346 + $0x78] sm:$0xff] %v2101
      $region64: #{arma2_forward.1} parent=55 // pred_fallthru
        _
      %s2118 = smul.u32 16, %s25
      %p2119 = scmp.lt.s32.totalorder %s2118, 15
      %s2120 = scalar_select %p2119, %s2118, 15
      %s2121 = smul.addr %s2120, 8
      %s2122 = scalar_lea.vmem %s9, %s2121
      // Predicated region
      $region65: #{arma2_forward.1} parent=55 // pred_check
        %p2123 = pneg %p244
      $region66: #{arma2_forward.1} parent=55 // pred_check_branch
        %2125 = sbr.rel (%p2123) target = $region68
      $region67: #{arma2_forward.1} parent=55 // pred_region
        %s2126 = smul.u32 16, %s25
      $region68: #{arma2_forward.1} parent=55 // pred_fallthru
        _
      // Predicated region
      $region69: #{arma2_forward.1} parent=55 // pred_check
        %p2127 = pneg %p244
      $region70: #{arma2_forward.1} parent=55 // pred_check_branch
        %2129 = sbr.rel (%p2127) target = $region72
      $region71: #{arma2_forward.1} parent=55 // pred_region
        %s2130 = smul.u32 16, %s25
        %p2131 = scmp.lt.s32.totalorder %s2130, 15
        %s2132 = scalar_select %p2131, %s2130, 15
        %s2133 = smul.addr %s2132, 8
        %s2134 = scalar_lea.vmem %s9, %s2133
      $region72: #{arma2_forward.1} parent=55 // pred_fallthru
        _
    $region56: #{arma2_forward.1} parent=5 // pred_fallthru
      _
    %p2135 = scmp.le.s32.totalorder 2, %s15
    // Predicated region
    $region73: #{arma2_forward.1} parent=5 // pred_check
      %p2136 = pneg %p2135
    $region74: #{arma2_forward.1} parent=5 // pred_check_branch
      %2138 = sbr.rel (%p2136) target = $region76
    $region75: #{arma2_forward.1} parent=5 // pred_region
      %s2139 = ssub.s32 %s15, 2
    $region76: #{arma2_forward.1} parent=5 // pred_fallthru
      _
  $region6: #{arma2_forward.1} parent=0 // loop_footer
    %s19 = sadd.s32 1, %s15
  $region7: #{arma2_forward.1} parent=0 // loop_footer_branch
    %14 = sbr.rel target = $region3
  $region8: #{arma2_forward.1} parent=0 // loop_exit
    _

</llo_original>
